<compile_context>
chip_gen: v7x
topology: tpu7x:2x2x1
jax: 0.10.0
libtpu: 0.0.40
codegen_flags: <defaults>
</compile_context>

<pallas_src>
import functools

import jax
import jax.numpy as jnp
from jax import lax
from jax.experimental import pallas as pl
from jax.experimental.pallas import tpu as pltpu


def _round_up(x, m):
    return (x + m - 1) // m * m


def _make_kernel(ksize, stride, ow_pad, cin_pad, row_chunks):
    """Fused conv (tap-folded single matmul per row chunk) + BN shift + ReLU."""

    def kernel(x_ref, w_ref, shift_ref, o_ref):
        # x_ref:     (1, HP, WP, Cin_pad)         bf16 padded input image
        # w_ref:     (KH*KW*Cin_pad, Cout_tile)   bf16, BN scale folded in
        # shift_ref: (1, Cout_tile)               f32 folded-BN shift
        # o_ref:     (1, M_pad, Cout_tile)        bf16 lane-dense output
        w = w_ref[...]                # hoisted: loaded once per grid step
        shift = shift_ref[...]
        for r0, tr in row_chunks:     # static, unrolled row chunks
            m = tr * ow_pad
            pieces = []
            for ki in range(ksize):
                for kj in range(ksize):
                    if stride == 1:
                        rows = pl.ds(r0 + ki, tr)
                        cols = pl.ds(kj, ow_pad)
                    else:
                        # TODO(synk): space-to-depth in the wrapper for stride>1
                        # to eliminate strided column reads entirely.
                        rows = pl.ds(r0 * stride + ki, tr, stride)
                        cols = pl.ds(kj, ow_pad, stride)
                    xs = x_ref[0, rows, cols, :]       # (tr, OW_pad, Cin_pad)
                    pieces.append(xs.reshape(m, cin_pad))
            # One lane-axis concat -> single MXU pass with K = KH*KW*Cin_pad.
            slab = jnp.concatenate(pieces, axis=-1)    # (m, KH*KW*Cin_pad)
            y = jnp.dot(slab, w, preferred_element_type=jnp.float32)
            y = jnp.maximum(y + shift, 0.0)            # f32 epilogue
            o_ref[0, pl.ds(r0 * ow_pad, m), :] = y.astype(o_ref.dtype)

    return kernel


@functools.partial(jax.jit, static_argnames=("ksize", "stride"))
def base_conv_forward_nhwc(x_nhwc, weight, gamma, beta, running_mean,
                           running_var, *, ksize, stride):
    """BaseConv.forward: ReLU(BatchNorm2d(Conv2d(x))), BN in inference mode,
    bias=False, groups=1, eps=1e-3, act='relu'. NHWC in / NHWC (bf16) out."""
    eps = 1e-3
    pad = (ksize - 1) // 2
    n, h, w_in, cin = x_nhwc.shape
    cout = weight.shape[0]
    oh = (h + 2 * pad - ksize) // stride + 1
    ow = (w_in + 2 * pad - ksize) // stride + 1
    kk = ksize * ksize

    # Padding targets: lane-dense Cout, bf16-sublane-aligned OW, aligned Cin.
    ow_pad = _round_up(ow, 16)        # bf16 sublane packing -> layout-free collapse
    m_pad = oh * ow_pad
    cout_pad = _round_up(cout, 128)
    cin_pad = _round_up(cin, 8)

    # Cout tile: 256 fills the v6e/v7x MXU N dim; 128 matches v5e's 4x128^2 MXU.
    tn = 256 if cout_pad % 256 == 0 else 128

    # Fold BN (inference / running stats) into a weight scale + channel shift.
    scale = gamma * lax.rsqrt(running_var + eps)
    shift = beta - running_mean * scale
    wf = weight.astype(jnp.float32) * scale[:, None, None, None]
    # (Cout, Cin, KH, KW) -> (KH*KW, Cin_pad, Cout_pad) -> flat contraction dim.
    w_taps = jnp.transpose(wf, (2, 3, 1, 0)).reshape(kk, cin, cout)
    w_taps = jnp.pad(w_taps, ((0, 0), (0, cin_pad - cin), (0, cout_pad - cout)))
    w_flat = w_taps.reshape(kk * cin_pad, cout_pad).astype(jnp.bfloat16)
    shift_p = jnp.pad(shift.astype(jnp.float32),
                      (0, cout_pad - cout)).reshape(1, cout_pad)

    # Single padded NHWC bf16 image (no 9x im2col materialization in HBM).
    hp = (oh - 1) * stride + ksize
    wp = (ow_pad - 1) * stride + ksize
    pad_h_hi = max(0, hp - h - pad)
    pad_w_hi = max(0, wp - w_in - pad)
    xp = jnp.pad(x_nhwc, ((0, 0), (pad, pad_h_hi), (pad, pad_w_hi),
                          (0, cin_pad - cin)))
    xp = xp[:, :hp, :wp, :].astype(jnp.bfloat16)

    # Static row chunks: ~128 output positions per chunk, at most ~16 chunks.
    tr = max(1, 128 // ow_pad)
    tr = max(tr, -(-oh // 16))
    tr = min(tr, oh)
    row_chunks = tuple((r0, min(tr, oh - r0)) for r0 in range(0, oh, tr))

    kernel = _make_kernel(ksize, stride, ow_pad, cin_pad, row_chunks)

    # Rough scoped-VMEM budget (double-buffered blocks); only raise the limit
    # above the default when needed.
    need = 2 * (hp * wp * cin_pad * 2 + kk * cin_pad * tn * 2
                + m_pad * tn * 2 + tn * 4) + (2 << 20)
    vmem_limit = None if need <= (16 << 20) else min(need, 48 << 20)
    # TODO(synk): for production H/W on v7x (64 MiB VMEM/TC) add an output-row-
    # tile grid axis with halo (pl.Element offsets or manual DMA) instead of
    # whole-image input blocks, and mark it "parallel" for megacore at N=1.

    out_flat = pl.pallas_call(
        kernel,
        out_shape=jax.ShapeDtypeStruct((n, m_pad, cout_pad), jnp.bfloat16),
        grid_spec=pltpu.PrefetchScalarGridSpec(
            num_scalar_prefetch=0,
            # Cout tiles outer, batch inner: weight/shift blocks depend only on
            # the outer axis, so they stay resident across the inner batch loop.
            grid=(cout_pad // tn, n),
            in_specs=[
                pl.BlockSpec((1, hp, wp, cin_pad), lambda co, b: (b, 0, 0, 0)),
                pl.BlockSpec((kk * cin_pad, tn), lambda co, b: (0, co)),
                pl.BlockSpec((1, tn), lambda co, b: (0, co)),
            ],
            out_specs=pl.BlockSpec((1, m_pad, tn), lambda co, b: (b, 0, co)),
        ),
        compiler_params=pltpu.CompilerParams(
            dimension_semantics=("parallel", "parallel"),
            vmem_limit_bytes=vmem_limit),
    )(xp, w_flat, shift_p)

    # Drop padding; stays NHWC bf16 (callers can fuse / cast as needed).
    out = out_flat.reshape(n, oh, ow_pad, cout_pad)[:, :, :ow, :cout]
    return out


def base_conv_forward(x_nchw, weight, gamma, beta, running_mean, running_var,
                      *, ksize, stride):
    """PyTorch-parity entry point (NCHW in / NCHW out). Production callers
    should use base_conv_forward_nhwc and keep activations NHWC to avoid the
    two extra HBM transpose passes."""
    x_nhwc = jnp.transpose(x_nchw, (0, 2, 3, 1))
    y = base_conv_forward_nhwc(x_nhwc, weight, gamma, beta, running_mean,
                               running_var, ksize=ksize, stride=stride)
    return jnp.transpose(y, (0, 3, 1, 2))


def _reference(x_nchw, weight, gamma, beta, running_mean, running_var,
               ksize, stride):
    """Pure-JAX reference with the same bf16 input/weight rounding as the kernel."""
    eps = 1e-3
    pad = (ksize - 1) // 2
    scale = gamma * lax.rsqrt(running_var + eps)
    shift = beta - running_mean * scale
    wf = weight.astype(jnp.float32) * scale[:, None, None, None]
    wf = wf.astype(jnp.bfloat16).astype(jnp.float32)
    xb = x_nchw.astype(jnp.bfloat16).astype(jnp.float32)
    y = lax.conv_general_dilated(
        xb, wf, window_strides=(stride, stride),
        padding=[(pad, pad), (pad, pad)],
        dimension_numbers=("NCHW", "OIHW", "NCHW"),
        precision=lax.Precision.HIGHEST)
    y = y + shift[None, :, None, None]
    return jnp.maximum(y, 0.0)


if __name__ == "__main__":
    # BaseConv(in_channels=4, out_channels=8, ksize=3, stride=1, act='relu')
    N, Cin, H, W = 2, 4, 16, 16
    Cout, K, S = 8, 3, 1

    key = jax.random.PRNGKey(0)
    kx, kw, km, kv = jax.random.split(key, 4)

    x = jax.random.normal(kx, (N, Cin, H, W), dtype=jnp.float32)

    # Deterministic synthetic parameters (Conv2d bias=False).
    fan_in = Cin * K * K
    weight = jax.random.normal(kw, (Cout, Cin, K, K), dtype=jnp.float32)
    weight = weight * (1.0 / jnp.sqrt(fan_in))
    gamma = jnp.ones((Cout,), jnp.float32)
    beta = jnp.zeros((Cout,), jnp.float32)
    running_mean = 0.1 * jax.random.normal(km, (Cout,), dtype=jnp.float32)
    running_var = 1.0 + 0.1 * jax.random.uniform(kv, (Cout,), dtype=jnp.float32)

    out = base_conv_forward(x, weight, gamma, beta, running_mean, running_var,
                            ksize=K, stride=S)
    out = jax.block_until_ready(out)

    ref = _reference(x, weight, gamma, beta, running_mean, running_var, K, S)
    assert out.shape == (N, Cout, H, W), out.shape
    out_f32 = out.astype(jnp.float32)
    max_err = float(jnp.max(jnp.abs(out_f32 - ref)))
    # Kernel output is bf16 (intentional, halves writeback): tolerance covers
    # one bf16 rounding of the final value.
    assert jnp.allclose(out_f32, ref, atol=2e-2, rtol=2e-2), max_err

    print("KERNEL_OK")
</pallas_src>

<mosaic_0001>
module attributes {stable_mosaic.version = 11 : i64} {
  func.func @kernel(%arg0: i32, %arg1: i32, %arg2: memref<1x18x18x8xbf16, #tpu.memory_space<vmem>>, %arg3: memref<72x128xbf16, #tpu.memory_space<vmem>>, %arg4: memref<1x128xf32, #tpu.memory_space<vmem>>, %arg5: memref<1x256x128xbf16, #tpu.memory_space<vmem>>) attributes {dimension_semantics = [#tpu.dimension_semantics<parallel>, #tpu.dimension_semantics<parallel>], iteration_bounds = array<i64: 1, 2>, scalar_prefetch = 0 : i64, scratch_operands = 0 : i64, tpu.core_type = #tpu.core_type<tc>, window_params = [{transform_indices = @transform_0, window_bounds = array<i64: 1, 18, 18, 8>}, {transform_indices = @transform_1, window_bounds = array<i64: 72, 128>}, {transform_indices = @transform_2, window_bounds = array<i64: 1, 128>}, {transform_indices = @transform_3, window_bounds = array<i64: 1, 256, 128>}]} {
    %c0 = arith.constant 0 : index
    %c0_0 = arith.constant 0 : index
    %0 = vector.load %arg3[%c0, %c0_0] : memref<72x128xbf16, #tpu.memory_space<vmem>>, vector<72x128xbf16>
    %c0_1 = arith.constant 0 : index
    %c0_2 = arith.constant 0 : index
    %1 = vector.load %arg4[%c0_1, %c0_2] : memref<1x128xf32, #tpu.memory_space<vmem>>, vector<1x128xf32>
    %c0_3 = arith.constant 0 : index
    %c0_4 = arith.constant 0 : index
    %c0_5 = arith.constant 0 : index
    %c0_6 = arith.constant 0 : index
    %2 = vector.load %arg2[%c0_3, %c0_4, %c0_5, %c0_6] : memref<1x18x18x8xbf16, #tpu.memory_space<vmem>>, vector<1x8x16x8xbf16>
    %3 = vector.shape_cast %2 : vector<1x8x16x8xbf16> to vector<8x16x8xbf16>
    %4 = vector.shape_cast %3 : vector<8x16x8xbf16> to vector<128x8xbf16>
    %c0_7 = arith.constant 0 : index
    %c0_8 = arith.constant 0 : index
    %c1 = arith.constant 1 : index
    %c0_9 = arith.constant 0 : index
    %5 = vector.load %arg2[%c0_7, %c0_8, %c1, %c0_9] : memref<1x18x18x8xbf16, #tpu.memory_space<vmem>>, vector<1x8x16x8xbf16>
    %6 = vector.shape_cast %5 : vector<1x8x16x8xbf16> to vector<8x16x8xbf16>
    %7 = vector.shape_cast %6 : vector<8x16x8xbf16> to vector<128x8xbf16>
    %c0_10 = arith.constant 0 : index
    %c0_11 = arith.constant 0 : index
    %c2 = arith.constant 2 : index
    %c0_12 = arith.constant 0 : index
    %8 = vector.load %arg2[%c0_10, %c0_11, %c2, %c0_12] : memref<1x18x18x8xbf16, #tpu.memory_space<vmem>>, vector<1x8x16x8xbf16>
    %9 = vector.shape_cast %8 : vector<1x8x16x8xbf16> to vector<8x16x8xbf16>
    %10 = vector.shape_cast %9 : vector<8x16x8xbf16> to vector<128x8xbf16>
    %c0_13 = arith.constant 0 : index
    %c1_14 = arith.constant 1 : index
    %c0_15 = arith.constant 0 : index
    %c0_16 = arith.constant 0 : index
    %11 = vector.load %arg2[%c0_13, %c1_14, %c0_15, %c0_16] : memref<1x18x18x8xbf16, #tpu.memory_space<vmem>>, vector<1x8x16x8xbf16>
    %12 = vector.shape_cast %11 : vector<1x8x16x8xbf16> to vector<8x16x8xbf16>
    %13 = vector.shape_cast %12 : vector<8x16x8xbf16> to vector<128x8xbf16>
    %c0_17 = arith.constant 0 : index
    %c1_18 = arith.constant 1 : index
    %c1_19 = arith.constant 1 : index
    %c0_20 = arith.constant 0 : index
    %14 = vector.load %arg2[%c0_17, %c1_18, %c1_19, %c0_20] : memref<1x18x18x8xbf16, #tpu.memory_space<vmem>>, vector<1x8x16x8xbf16>
    %15 = vector.shape_cast %14 : vector<1x8x16x8xbf16> to vector<8x16x8xbf16>
    %16 = vector.shape_cast %15 : vector<8x16x8xbf16> to vector<128x8xbf16>
    %c0_21 = arith.constant 0 : index
    %c1_22 = arith.constant 1 : index
    %c2_23 = arith.constant 2 : index
    %c0_24 = arith.constant 0 : index
    %17 = vector.load %arg2[%c0_21, %c1_22, %c2_23, %c0_24] : memref<1x18x18x8xbf16, #tpu.memory_space<vmem>>, vector<1x8x16x8xbf16>
    %18 = vector.shape_cast %17 : vector<1x8x16x8xbf16> to vector<8x16x8xbf16>
    %19 = vector.shape_cast %18 : vector<8x16x8xbf16> to vector<128x8xbf16>
    %c0_25 = arith.constant 0 : index
    %c2_26 = arith.constant 2 : index
    %c0_27 = arith.constant 0 : index
    %c0_28 = arith.constant 0 : index
    %20 = vector.load %arg2[%c0_25, %c2_26, %c0_27, %c0_28] : memref<1x18x18x8xbf16, #tpu.memory_space<vmem>>, vector<1x8x16x8xbf16>
    %21 = vector.shape_cast %20 : vector<1x8x16x8xbf16> to vector<8x16x8xbf16>
    %22 = vector.shape_cast %21 : vector<8x16x8xbf16> to vector<128x8xbf16>
    %c0_29 = arith.constant 0 : index
    %c2_30 = arith.constant 2 : index
    %c1_31 = arith.constant 1 : index
    %c0_32 = arith.constant 0 : index
    %23 = vector.load %arg2[%c0_29, %c2_30, %c1_31, %c0_32] : memref<1x18x18x8xbf16, #tpu.memory_space<vmem>>, vector<1x8x16x8xbf16>
    %24 = vector.shape_cast %23 : vector<1x8x16x8xbf16> to vector<8x16x8xbf16>
    %25 = vector.shape_cast %24 : vector<8x16x8xbf16> to vector<128x8xbf16>
    %c0_33 = arith.constant 0 : index
    %c2_34 = arith.constant 2 : index
    %c2_35 = arith.constant 2 : index
    %c0_36 = arith.constant 0 : index
    %26 = vector.load %arg2[%c0_33, %c2_34, %c2_35, %c0_36] : memref<1x18x18x8xbf16, #tpu.memory_space<vmem>>, vector<1x8x16x8xbf16>
    %27 = vector.shape_cast %26 : vector<1x8x16x8xbf16> to vector<8x16x8xbf16>
    %28 = vector.shape_cast %27 : vector<8x16x8xbf16> to vector<128x8xbf16>
    %29 = tpu.concatenate %4, %7, %10, %13, %16, %19, %22, %25, %28 in 1 : vector<128x8xbf16>, vector<128x8xbf16>, vector<128x8xbf16>, vector<128x8xbf16>, vector<128x8xbf16>, vector<128x8xbf16>, vector<128x8xbf16>, vector<128x8xbf16>, vector<128x8xbf16> -> vector<128x72xbf16>
    %cst = arith.constant dense<0.000000e+00> : vector<128x128xf32>
    %30 = tpu.matmul %29, %0, %cst {dimension_numbers = #tpu.dot_dimension_numbers<[1], [0], [0], [1], [0, 0, 1, 1], [], []>} : vector<128x72xbf16>, vector<72x128xbf16>, vector<128x128xf32> -> vector<128x128xf32>
    %31 = vector.broadcast %1 : vector<1x128xf32> to vector<128x128xf32>
    %32 = arith.addf %30, %31 : vector<128x128xf32>
    %cst_37 = arith.constant 0.000000e+00 : f32
    %33 = vector.broadcast %cst_37 : f32 to vector<128x128xf32>
    %34 = arith.maximumf %32, %33 : vector<128x128xf32>
    %35 = arith.truncf %34 : vector<128x128xf32> to vector<128x128xbf16>
    %c0_38 = arith.constant 0 : index
    %c0_39 = arith.constant 0 : index
    %c0_40 = arith.constant 0 : index
    %36 = vector.load %arg5[%c0_38, %c0_39, %c0_40] : memref<1x256x128xbf16, #tpu.memory_space<vmem>>, vector<1x128x128xbf16>
    %37 = vector.shape_cast %36 : vector<1x128x128xbf16> to vector<128x128xbf16>
    %38 = vector.shape_cast %35 : vector<128x128xbf16> to vector<1x128x128xbf16>
    tpu.vector_store %arg5[%c0_38, %c0_39, %c0_40], %38 {strides = array<i32>} : memref<1x256x128xbf16, #tpu.memory_space<vmem>>, vector<1x128x128xbf16>,
    %c0_41 = arith.constant 0 : index
    %c8 = arith.constant 8 : index
    %c0_42 = arith.constant 0 : index
    %c0_43 = arith.constant 0 : index
    %39 = vector.load %arg2[%c0_41, %c8, %c0_42, %c0_43] : memref<1x18x18x8xbf16, #tpu.memory_space<vmem>>, vector<1x8x16x8xbf16>
    %40 = vector.shape_cast %39 : vector<1x8x16x8xbf16> to vector<8x16x8xbf16>
    %41 = vector.shape_cast %40 : vector<8x16x8xbf16> to vector<128x8xbf16>
    %c0_44 = arith.constant 0 : index
    %c8_45 = arith.constant 8 : index
    %c1_46 = arith.constant 1 : index
    %c0_47 = arith.constant 0 : index
    %42 = vector.load %arg2[%c0_44, %c8_45, %c1_46, %c0_47] : memref<1x18x18x8xbf16, #tpu.memory_space<vmem>>, vector<1x8x16x8xbf16>
    %43 = vector.shape_cast %42 : vector<1x8x16x8xbf16> to vector<8x16x8xbf16>
    %44 = vector.shape_cast %43 : vector<8x16x8xbf16> to vector<128x8xbf16>
    %c0_48 = arith.constant 0 : index
    %c8_49 = arith.constant 8 : index
    %c2_50 = arith.constant 2 : index
    %c0_51 = arith.constant 0 : index
    %45 = vector.load %arg2[%c0_48, %c8_49, %c2_50, %c0_51] : memref<1x18x18x8xbf16, #tpu.memory_space<vmem>>, vector<1x8x16x8xbf16>
    %46 = vector.shape_cast %45 : vector<1x8x16x8xbf16> to vector<8x16x8xbf16>
    %47 = vector.shape_cast %46 : vector<8x16x8xbf16> to vector<128x8xbf16>
    %c0_52 = arith.constant 0 : index
    %c9 = arith.constant 9 : index
    %c0_53 = arith.constant 0 : index
    %c0_54 = arith.constant 0 : index
    %48 = vector.load %arg2[%c0_52, %c9, %c0_53, %c0_54] : memref<1x18x18x8xbf16, #tpu.memory_space<vmem>>, vector<1x8x16x8xbf16>
    %49 = vector.shape_cast %48 : vector<1x8x16x8xbf16> to vector<8x16x8xbf16>
    %50 = vector.shape_cast %49 : vector<8x16x8xbf16> to vector<128x8xbf16>
    %c0_55 = arith.constant 0 : index
    %c9_56 = arith.constant 9 : index
    %c1_57 = arith.constant 1 : index
    %c0_58 = arith.constant 0 : index
    %51 = vector.load %arg2[%c0_55, %c9_56, %c1_57, %c0_58] : memref<1x18x18x8xbf16, #tpu.memory_space<vmem>>, vector<1x8x16x8xbf16>
    %52 = vector.shape_cast %51 : vector<1x8x16x8xbf16> to vector<8x16x8xbf16>
    %53 = vector.shape_cast %52 : vector<8x16x8xbf16> to vector<128x8xbf16>
    %c0_59 = arith.constant 0 : index
    %c9_60 = arith.constant 9 : index
    %c2_61 = arith.constant 2 : index
    %c0_62 = arith.constant 0 : index
    %54 = vector.load %arg2[%c0_59, %c9_60, %c2_61, %c0_62] : memref<1x18x18x8xbf16, #tpu.memory_space<vmem>>, vector<1x8x16x8xbf16>
    %55 = vector.shape_cast %54 : vector<1x8x16x8xbf16> to vector<8x16x8xbf16>
    %56 = vector.shape_cast %55 : vector<8x16x8xbf16> to vector<128x8xbf16>
    %c0_63 = arith.constant 0 : index
    %c10 = arith.constant 10 : index
    %c0_64 = arith.constant 0 : index
    %c0_65 = arith.constant 0 : index
    %57 = vector.load %arg2[%c0_63, %c10, %c0_64, %c0_65] : memref<1x18x18x8xbf16, #tpu.memory_space<vmem>>, vector<1x8x16x8xbf16>
    %58 = vector.shape_cast %57 : vector<1x8x16x8xbf16> to vector<8x16x8xbf16>
    %59 = vector.shape_cast %58 : vector<8x16x8xbf16> to vector<128x8xbf16>
    %c0_66 = arith.constant 0 : index
    %c10_67 = arith.constant 10 : index
    %c1_68 = arith.constant 1 : index
    %c0_69 = arith.constant 0 : index
    %60 = vector.load %arg2[%c0_66, %c10_67, %c1_68, %c0_69] : memref<1x18x18x8xbf16, #tpu.memory_space<vmem>>, vector<1x8x16x8xbf16>
    %61 = vector.shape_cast %60 : vector<1x8x16x8xbf16> to vector<8x16x8xbf16>
    %62 = vector.shape_cast %61 : vector<8x16x8xbf16> to vector<128x8xbf16>
    %c0_70 = arith.constant 0 : index
    %c10_71 = arith.constant 10 : index
    %c2_72 = arith.constant 2 : index
    %c0_73 = arith.constant 0 : index
    %63 = vector.load %arg2[%c0_70, %c10_71, %c2_72, %c0_73] : memref<1x18x18x8xbf16, #tpu.memory_space<vmem>>, vector<1x8x16x8xbf16>
    %64 = vector.shape_cast %63 : vector<1x8x16x8xbf16> to vector<8x16x8xbf16>
    %65 = vector.shape_cast %64 : vector<8x16x8xbf16> to vector<128x8xbf16>
    %66 = tpu.concatenate %41, %44, %47, %50, %53, %56, %59, %62, %65 in 1 : vector<128x8xbf16>, vector<128x8xbf16>, vector<128x8xbf16>, vector<128x8xbf16>, vector<128x8xbf16>, vector<128x8xbf16>, vector<128x8xbf16>, vector<128x8xbf16>, vector<128x8xbf16> -> vector<128x72xbf16>
    %cst_74 = arith.constant dense<0.000000e+00> : vector<128x128xf32>
    %67 = tpu.matmul %66, %0, %cst_74 {dimension_numbers = #tpu.dot_dimension_numbers<[1], [0], [0], [1], [0, 0, 1, 1], [], []>} : vector<128x72xbf16>, vector<72x128xbf16>, vector<128x128xf32> -> vector<128x128xf32>
    %68 = vector.broadcast %1 : vector<1x128xf32> to vector<128x128xf32>
    %69 = arith.addf %67, %68 : vector<128x128xf32>
    %cst_75 = arith.constant 0.000000e+00 : f32
    %70 = vector.broadcast %cst_75 : f32 to vector<128x128xf32>
    %71 = arith.maximumf %69, %70 : vector<128x128xf32>
    %72 = arith.truncf %71 : vector<128x128xf32> to vector<128x128xbf16>
    %c0_76 = arith.constant 0 : index
    %c128 = arith.constant 128 : index
    %c0_77 = arith.constant 0 : index
    %73 = vector.load %arg5[%c0_76, %c128, %c0_77] : memref<1x256x128xbf16, #tpu.memory_space<vmem>>, vector<1x128x128xbf16>
    %74 = vector.shape_cast %73 : vector<1x128x128xbf16> to vector<128x128xbf16>
    %75 = vector.shape_cast %72 : vector<128x128xbf16> to vector<1x128x128xbf16>
    tpu.vector_store %arg5[%c0_76, %c128, %c0_77], %75 {strides = array<i32>} : memref<1x256x128xbf16, #tpu.memory_space<vmem>>, vector<1x128x128xbf16>,
    return
  }
  func.func @transform_0(%arg0: i32, %arg1: i32) -> (i32, i32, i32, i32) {
    %c0_i32 = arith.constant 0 : i32
    %c0_i32_0 = arith.constant 0 : i32
    %c0_i32_1 = arith.constant 0 : i32
    %c0_i32_2 = arith.constant 0 : i32
    return %arg1, %c0_i32, %c0_i32_0, %c0_i32_1 : i32, i32, i32, i32
  }
  func.func @transform_1(%arg0: i32, %arg1: i32) -> (i32, i32) {
    %c0_i32 = arith.constant 0 : i32
    %c0_i32_0 = arith.constant 0 : i32
    return %c0_i32, %arg0 : i32, i32
  }
  func.func @transform_2(%arg0: i32, %arg1: i32) -> (i32, i32) {
    %c0_i32 = arith.constant 0 : i32
    %c0_i32_0 = arith.constant 0 : i32
    return %c0_i32, %arg0 : i32, i32
  }
  func.func @transform_3(%arg0: i32, %arg1: i32) -> (i32, i32, i32) {
    %c0_i32 = arith.constant 0 : i32
    %c0_i32_0 = arith.constant 0 : i32
    return %arg1, %c0_i32, %arg0 : i32, i32, i32
  }
}

</mosaic_0001>

<llo_original>
// kernel: base_conv_forward_nhwc.1
$region0: #{base_conv_forward_nhwc.1}
  #allocation0 [shape = 'u32[]', space=smem, size = 0x4, offset = 0x4, fixed_abs, tag = 'smem constant byte address 0x4 - core index']
  #allocation1 [shape = 'u32[144,128]{1,0:T(1,128)}', space=vmem, size = 0x12000, scoped, tag = 'internal scratch']
  %s0 = inlined_call_operand.vmem [shape: bf16[2,18,18,8], index: 0, kind: input, shape index: {}]
  %s1 = inlined_call_operand.vmem [shape: bf16[72,128], index: 1, kind: input, shape index: {}]
  %s2 = inlined_call_operand.vmem [shape: f32[1,128], index: 2, kind: input, shape index: {}]
  %s3 = inlined_call_operand.vmem [shape: bf16[2,256,128], index: 3, kind: output, shape index: {}]
  %s4 = sld [smem:[#allocation0]]
  $region45: #{base_conv_forward_nhwc.1} parent=0
    _
  %s6 = ssub.s32 1, %s4
  %s7 = scalar_select 0, %s6, %s4
  loop: start=0, step=1, limit=4
  $region2: #{base_conv_forward_nhwc.1} parent=0 // loop_pre_header
    _
  $region3: #{base_conv_forward_nhwc.1} parent=0 // loop_header
    %s9 = sphi 0, %s13
    %p10 = scmp.ge.s32.totalorder %s9, 4
    %s16 = sphi 0, %s28
    %s17 = sphi 0, %s24
    %s18 = sphi 0, %s16
    %s19 = sphi 0, %s17
    %s20 = sphi 0, %s18
    %s21 = sphi 0, %s19
    %s31 = sphi 0, %s33
    %s34 = sphi 0, %s31
    %s35 = sphi 0, %s34
    %s51 = sphi 0, %s35
    %s57 = sphi 0, %s59
    %s60 = sphi 0, %s57
    %s61 = sphi 0, %s60
    %s77 = sphi 0, %s61
    %s83 = sphi 0, %s85
    %s86 = sphi 0, %s83
    %s87 = sphi 0, %s86
    %s103 = sphi 0, %s87
    %s111 = sphi 0, %s113
    %s114 = sphi 0, %s111
    %s115 = sphi 0, %s114
    %s131 = sphi 0, %s115
  $region4: #{base_conv_forward_nhwc.1} parent=0 // loop_header_branch
    %12 = sbr.rel (%p10) target = $region8
  $region5: #{base_conv_forward_nhwc.1} parent=0 // loop_body
    %s14 = ssub.s32 %s9, 1
    %s15 = ssub.s32 %s9, 2
    %s22 = sadd.s32 1, %s17
    %p23 = scmp.ge.s32.totalorder %s22, 2
    %s24 = scalar_select %p23, 0, %s22
    %s25 = sadd.s32 1, %s16
    %s26 = scalar_select %p23, %s25, %s16
    %p27 = scmp.ge.s32.totalorder %s26, 1
    %s28 = scalar_select %p27, 0, %s26
    %s29 = ssub.s32 %s17, %s24
    %p30 = scmp.eq.s32.totalorder %s29, 0
    %s32 = sadd.s32 %s31, 1
    %s33 = scalar_select %p30, %s31, %s32
    %p36 = pneg %p30
    %p37 = scmp.eq.s32.totalorder %s9, 1
    %p38 = por %p36, %p37
    %p39 = scmp.ne.s32.totalorder %s31, %s34
    %p40 = scmp.eq.s32.totalorder %s9, 0
    %p41 = por %p39, %p40
    %p42 = scmp.ne.s32.totalorder %s31, %s34
    %p43 = scmp.eq.s32.totalorder %s14, 1
    %p44 = por %p42, %p43
    %p45 = scmp.ne.s32.totalorder %s34, %s35
    %p46 = scmp.eq.s32.totalorder %s14, 0
    %p47 = por %p45, %p46
    %p48 = scmp.ne.s32.totalorder %s34, %s35
    %p49 = scmp.eq.s32.totalorder %s15, 1
    %p50 = por %p48, %p49
    %p52 = scmp.ne.s32.totalorder %s35, %s51
    %p53 = scmp.eq.s32.totalorder %s15, 0
    %p54 = por %p52, %p53
    %s55 = ssub.s32 %s16, %s28
    %p56 = scmp.eq.s32.totalorder %s55, 0
    %s58 = sadd.s32 %s57, 1
    %s59 = scalar_select %p56, %s57, %s58
    %p62 = pneg %p56
    %p63 = scmp.eq.s32.totalorder %s9, 1
    %p64 = por %p62, %p63
    %p65 = scmp.ne.s32.totalorder %s57, %s60
    %p66 = scmp.eq.s32.totalorder %s9, 0
    %p67 = por %p65, %p66
    %p68 = scmp.ne.s32.totalorder %s57, %s60
    %p69 = scmp.eq.s32.totalorder %s14, 1
    %p70 = por %p68, %p69
    %p71 = scmp.ne.s32.totalorder %s60, %s61
    %p72 = scmp.eq.s32.totalorder %s14, 0
    %p73 = por %p71, %p72
    %p74 = scmp.ne.s32.totalorder %s60, %s61
    %p75 = scmp.eq.s32.totalorder %s15, 1
    %p76 = por %p74, %p75
    %p78 = scmp.ne.s32.totalorder %s61, %s77
    %p79 = scmp.eq.s32.totalorder %s15, 0
    %p80 = por %p78, %p79
    %s81 = ssub.s32 %s16, %s28
    %p82 = scmp.eq.s32.totalorder %s81, 0
    %s84 = sadd.s32 %s83, 1
    %s85 = scalar_select %p82, %s83, %s84
    %p88 = pneg %p82
    %p89 = scmp.eq.s32.totalorder %s9, 1
    %p90 = por %p88, %p89
    %p91 = scmp.ne.s32.totalorder %s83, %s86
    %p92 = scmp.eq.s32.totalorder %s9, 0
    %p93 = por %p91, %p92
    %p94 = scmp.ne.s32.totalorder %s83, %s86
    %p95 = scmp.eq.s32.totalorder %s14, 1
    %p96 = por %p94, %p95
    %p97 = scmp.ne.s32.totalorder %s86, %s87
    %p98 = scmp.eq.s32.totalorder %s14, 0
    %p99 = por %p97, %p98
    %p100 = scmp.ne.s32.totalorder %s86, %s87
    %p101 = scmp.eq.s32.totalorder %s15, 1
    %p102 = por %p100, %p101
    %p104 = scmp.ne.s32.totalorder %s87, %s103
    %p105 = scmp.eq.s32.totalorder %s15, 0
    %p106 = por %p104, %p105
    %s107 = ssub.s32 %s17, %s24
    %s108 = ssub.s32 %s16, %s28
    %s109 = sor.u32 %s107, %s108
    %p110 = scmp.eq.s32.totalorder %s109, 0
    %s112 = sadd.s32 %s111, 1
    %s113 = scalar_select %p110, %s111, %s112
    %p116 = pneg %p110
    %p117 = scmp.eq.s32.totalorder %s9, 1
    %p118 = por %p116, %p117
    %p119 = scmp.ne.s32.totalorder %s111, %s114
    %p120 = scmp.eq.s32.totalorder %s9, 0
    %p121 = por %p119, %p120
    %p122 = scmp.ne.s32.totalorder %s111, %s114
    %p123 = scmp.eq.s32.totalorder %s14, 1
    %p124 = por %p122, %p123
    %p125 = scmp.ne.s32.totalorder %s114, %s115
    %p126 = scmp.eq.s32.totalorder %s14, 0
    %p127 = por %p125, %p126
    %p128 = scmp.ne.s32.totalorder %s114, %s115
    %p129 = scmp.eq.s32.totalorder %s15, 1
    %p130 = por %p128, %p129
    %p132 = scmp.ne.s32.totalorder %s115, %s131
    %p133 = scmp.eq.s32.totalorder %s15, 0
    %p134 = por %p132, %p133
    %p135 = scmp.le.s32.totalorder 1, %s9
    %p136 = scmp.lt.s32.totalorder %s9, 3
    %p137 = pnand %p135, %p136
    %p138 = pneg %p137
    // Predicated region
    $region9: #{base_conv_forward_nhwc.1} parent=5 // pred_check
      _
    $region10: #{base_conv_forward_nhwc.1} parent=5 // pred_check_branch
      %140 = sbr.rel (%p137) target = $region12
    $region11: #{base_conv_forward_nhwc.1} parent=5 // pred_region
      %s141 = ssub.s32 %s9, 1
      // Predicated region
      $region13: #{base_conv_forward_nhwc.1} parent=11 // pred_check
        %p142 = pneg %p73
      $region14: #{base_conv_forward_nhwc.1} parent=11 // pred_check_branch
        %144 = sbr.rel (%p142) target = $region16
      $region15: #{base_conv_forward_nhwc.1} parent=11 // pred_region
        %p145 = scmp.lt.s32.totalorder %s18, 0
        %s146 = scalar_select %p145, %s18, 0
        %s147 = smul.addr %s146, 4
        %s148 = scalar_lea.vmem %s1, %s147
      $region16: #{base_conv_forward_nhwc.1} parent=11 // pred_fallthru
        _
      // Predicated region
      $region17: #{base_conv_forward_nhwc.1} parent=11 // pred_check
        %p149 = pneg %p99
      $region18: #{base_conv_forward_nhwc.1} parent=11 // pred_check_branch
        %151 = sbr.rel (%p149) target = $region20
      $region19: #{base_conv_forward_nhwc.1} parent=11 // pred_region
        %p152 = scmp.lt.s32.totalorder %s18, 0
        %s153 = scalar_select %p152, %s18, 0
        %s154 = scalar_lea.vmem %s2, %s153
      $region20: #{base_conv_forward_nhwc.1} parent=11 // pred_fallthru
        _
    $region12: #{base_conv_forward_nhwc.1} parent=5 // pred_fallthru
      _
    %p155 = scmp.lt.s32.totalorder %s9, 2
    // Predicated region
    $region21: #{base_conv_forward_nhwc.1} parent=5 // pred_check
      %p156 = pneg %p155
    $region22: #{base_conv_forward_nhwc.1} parent=5 // pred_check_branch
      %158 = sbr.rel (%p156) target = $region24
    $region23: #{base_conv_forward_nhwc.1} parent=5 // pred_region
      // Predicated region
      $region25: #{base_conv_forward_nhwc.1} parent=23 // pred_check
        %p159 = pneg %p41
      $region26: #{base_conv_forward_nhwc.1} parent=23 // pred_check_branch
        %161 = sbr.rel (%p159) target = $region28
      $region27: #{base_conv_forward_nhwc.1} parent=23 // pred_region
        %p162 = scmp.lt.s32.totalorder %s17, 1
        %s163 = scalar_select %p162, %s17, 1
        %s164 = smul.addr %s163, 54
        %s165 = smul.addr %s164, 4
        %s166 = scalar_lea.vmem %s0, %s165
      $region28: #{base_conv_forward_nhwc.1} parent=23 // pred_fallthru
        _
    $region24: #{base_conv_forward_nhwc.1} parent=5 // pred_fallthru
      _
    %p167 = scmp.le.s32.totalorder 1, %s9
    %p168 = scmp.lt.s32.totalorder %s9, 3
    %p169 = pnand %p167, %p168
    %p170 = pneg %p169
    // Predicated region
    $region29: #{base_conv_forward_nhwc.1} parent=5 // pred_check
      _
    $region30: #{base_conv_forward_nhwc.1} parent=5 // pred_check_branch
      %172 = sbr.rel (%p169) target = $region32
    $region31: #{base_conv_forward_nhwc.1} parent=5 // pred_region
      %s173 = ssub.s32 %s9, 1
      %p174 = scmp.lt.s32.totalorder %s19, 1
      %s175 = scalar_select %p174, %s19, 1
      %s176 = smul.addr %s175, 54
      %s177 = smul.addr %s176, 4
      %s178 = scalar_lea.vmem %s0, %s177
      %p179 = pneg %p47
      %p180 = pneg %p44
      %p181 = scmp.lt.s32.totalorder %s18, 0
      %s182 = scalar_select %p181, %s18, 0
      %s183 = smul.addr %s182, 4
      %s184 = scalar_lea.vmem %s1, %s183
      %p185 = pneg %p73
      %p186 = pneg %p70
      %p187 = scmp.lt.s32.totalorder %s18, 0
      %s188 = scalar_select %p187, %s18, 0
      %s189 = scalar_lea.vmem %s2, %s188
      %p190 = pneg %p99
      %p191 = pneg %p96
      %p192 = pneg %p127
      %p193 = pneg %p124
      %p194 = scmp.lt.s32.totalorder %s19, 1
      %s195 = scalar_select %p194, %s19, 1
      %p196 = scmp.lt.s32.totalorder %s18, 0
      %s197 = scalar_select %p196, %s18, 0
      %s198 = smul.addr %s195, 32
      %s199 = sadd.s32 %s197, %s198
      %s200 = smul.addr %s199, 4
      %s201 = scalar_lea.vmem %s3, %s200
      %p202 = scmp.lt.s32.totalorder %s19, 1
      %s203 = scalar_select %p202, %s19, 1
      %s204 = smul.addr %s203, 54
      %s205 = smul.addr %s204, 4
      %s206 = scalar_lea.vmem %s0, %s205
      %p207 = scmp.lt.s32.totalorder %s18, 0
      %s208 = scalar_select %p207, %s18, 0
      %s209 = smul.addr %s208, 4
      %s210 = scalar_lea.vmem %s1, %s209
      %p211 = scmp.lt.s32.totalorder %s18, 0
      %s212 = scalar_select %p211, %s18, 0
      %s213 = scalar_lea.vmem %s2, %s212
      %p214 = scmp.lt.s32.totalorder %s19, 1
      %s215 = scalar_select %p214, %s19, 1
      %p216 = scmp.lt.s32.totalorder %s18, 0
      %s217 = scalar_select %p216, %s18, 0
      %s218 = smul.addr %s215, 32
      %s219 = sadd.s32 %s217, %s218
      %s220 = smul.addr %s219, 4
      %s221 = scalar_lea.vmem %s3, %s220
      %v223 = vld [vmem:[%s210] sm:$0xf]
      %v224 = vld [vmem:[%s210 + $0x4] sm:$0xf]
      %v225 = vld [vmem:[%s210 + $0x8] sm:$0xf]
      %v226 = vld [vmem:[%s210 + $0xc] sm:$0xf]
      %v227 = vld [vmem:[%s210 + $0x10] sm:$0xf]
      %v228 = vld [vmem:[%s210 + $0x14] sm:$0xf]
      %v229 = vld [vmem:[%s210 + $0x18] sm:$0xf]
      %v230 = vld [vmem:[%s210 + $0x1c] sm:$0xf]
      %v231 = vld [vmem:[%s210 + $0x20] sm:$0xf]
      %v232 = vld [vmem:[%s213] sm:$0x1]
      %v233 = vld [vmem:[%s206] sm:$0xf]
      %v234 = vld [vmem:[%s206 + $0x4] sm:$0xf]
      %v235 = vld [vmem:[%s206 + $0xc] sm:$0xf]
      %v236 = vld [vmem:[%s206 + $0x10] sm:$0xf]
      %v237 = vld [vmem:[%s206 + $0x18] sm:$0xf]
      %v238 = vld [vmem:[%s206 + $0x1c] sm:$0xf]
      %v239 = vld [vmem:[%s206 + $0x24] sm:$0xf]
      %v240 = vld [vmem:[%s206 + $0x28] sm:$0xf]
      %v241 = vld [vmem:[%s206 + $0x30] sm:$0xf]
      %v242 = vld [vmem:[%s206 + $0x34] sm:$0xf]
      %v243 = vld [vmem:[%s206 + $0x3c] sm:$0xf]
      %v244 = vld [vmem:[%s206 + $0x40] sm:$0xf]
      %v245 = vld [vmem:[%s206 + $0x48] sm:$0xf]
      %v246 = vld [vmem:[%s206 + $0x4c] sm:$0xf]
      %v247 = vld [vmem:[%s206 + $0x54] sm:$0xf]
      %v248 = vld [vmem:[%s206 + $0x58] sm:$0xf]
      %v249 = vld [vmem:[%s206 + $0x8] sm:$0x1]
      %v250 = vld [vmem:[%s206 + $0x14] sm:$0x1]
      %v251 = vld [vmem:[%s206 + $0x20] sm:$0x1]
      %v252 = vld [vmem:[%s206 + $0x2c] sm:$0x1]
      %v253 = vld [vmem:[%s206 + $0x38] sm:$0x1]
      %v254 = vld [vmem:[%s206 + $0x44] sm:$0x1]
      %v255 = vld [vmem:[%s206 + $0x50] sm:$0x1]
      %v256 = vld [vmem:[%s206 + $0x5c] sm:$0x1]
      %vm257 = vsmask.f32 3328
      %vm258 = vsmask.f32 7440
      %vm259 = vmor %vm257, %vm258
      %v261 = vshrl.u32 %v233, 16
      %v263 = vrot.slane %v261, 4
      %v264 = vshll.u32 %v233, 16
      %v266 = vrot.slane %v264, 5
      %v267 = vor.u32 %v263, %v266
      %v268 = vrot.slane %v267, 4
      %v270 = vshll.u32 %v234, 16
      %v272 = vrot.slane %v270, 5
      %v273 = vsel %vm259, %v268, %v272
      %v274 = vshrl.u32 %v234, 16
      %v276 = vrot.slane %v274, 4
      %v277 = vor.u32 %v276, %v272
      %v278 = vrot.slane %v277, 4
      %v280 = vshll.u32 %v249, 16
      %v282 = vrot.slane %v280, 5
      %v283 = vsel %vm259, %v278, %v282
      %v285 = vshrl.u32 %v235, 16
      %v287 = vrot.slane %v285, 4
      %v288 = vshll.u32 %v235, 16
      %v290 = vrot.slane %v288, 5
      %v291 = vor.u32 %v287, %v290
      %v292 = vrot.slane %v291, 4
      %v294 = vshll.u32 %v236, 16
      %v296 = vrot.slane %v294, 5
      %v297 = vsel %vm259, %v292, %v296
      %v298 = vshrl.u32 %v236, 16
      %v300 = vrot.slane %v298, 4
      %v301 = vor.u32 %v300, %v296
      %v302 = vrot.slane %v301, 4
      %v304 = vshll.u32 %v250, 16
      %v306 = vrot.slane %v304, 5
      %v307 = vsel %vm259, %v302, %v306
      %v309 = vshrl.u32 %v237, 16
      %v311 = vrot.slane %v309, 4
      %v312 = vshll.u32 %v237, 16
      %v314 = vrot.slane %v312, 5
      %v315 = vor.u32 %v311, %v314
      %v316 = vrot.slane %v315, 4
      %v318 = vshll.u32 %v238, 16
      %v320 = vrot.slane %v318, 5
      %v321 = vsel %vm259, %v316, %v320
      %v322 = vshrl.u32 %v238, 16
      %v324 = vrot.slane %v322, 4
      %v325 = vor.u32 %v324, %v320
      %v326 = vrot.slane %v325, 4
      %v328 = vshll.u32 %v251, 16
      %v330 = vrot.slane %v328, 5
      %v331 = vsel %vm259, %v326, %v330
      %v333 = vshrl.u32 %v239, 16
      %v335 = vrot.slane %v333, 4
      %v336 = vshll.u32 %v239, 16
      %v338 = vrot.slane %v336, 5
      %v339 = vor.u32 %v335, %v338
      %v340 = vrot.slane %v339, 4
      %v342 = vshll.u32 %v240, 16
      %v344 = vrot.slane %v342, 5
      %v345 = vsel %vm259, %v340, %v344
      %v346 = vshrl.u32 %v240, 16
      %v348 = vrot.slane %v346, 4
      %v349 = vor.u32 %v348, %v344
      %v350 = vrot.slane %v349, 4
      %v352 = vshll.u32 %v252, 16
      %v354 = vrot.slane %v352, 5
      %v355 = vsel %vm259, %v350, %v354
      %v357 = vshrl.u32 %v241, 16
      %v359 = vrot.slane %v357, 4
      %v360 = vshll.u32 %v241, 16
      %v362 = vrot.slane %v360, 5
      %v363 = vor.u32 %v359, %v362
      %v364 = vrot.slane %v363, 4
      %v366 = vshll.u32 %v242, 16
      %v368 = vrot.slane %v366, 5
      %v369 = vsel %vm259, %v364, %v368
      %v370 = vshrl.u32 %v242, 16
      %v372 = vrot.slane %v370, 4
      %v373 = vor.u32 %v372, %v368
      %v374 = vrot.slane %v373, 4
      %v376 = vshll.u32 %v253, 16
      %v378 = vrot.slane %v376, 5
      %v379 = vsel %vm259, %v374, %v378
      %v381 = vshrl.u32 %v243, 16
      %v383 = vrot.slane %v381, 4
      %v384 = vshll.u32 %v243, 16
      %v386 = vrot.slane %v384, 5
      %v387 = vor.u32 %v383, %v386
      %v388 = vrot.slane %v387, 4
      %v390 = vshll.u32 %v244, 16
      %v392 = vrot.slane %v390, 5
      %v393 = vsel %vm259, %v388, %v392
      %v394 = vshrl.u32 %v244, 16
      %v396 = vrot.slane %v394, 4
      %v397 = vor.u32 %v396, %v392
      %v398 = vrot.slane %v397, 4
      %v400 = vshll.u32 %v254, 16
      %v402 = vrot.slane %v400, 5
      %v403 = vsel %vm259, %v398, %v402
      %v405 = vshrl.u32 %v245, 16
      %v407 = vrot.slane %v405, 4
      %v408 = vshll.u32 %v245, 16
      %v410 = vrot.slane %v408, 5
      %v411 = vor.u32 %v407, %v410
      %v412 = vrot.slane %v411, 4
      %v414 = vshll.u32 %v246, 16
      %v416 = vrot.slane %v414, 5
      %v417 = vsel %vm259, %v412, %v416
      %v418 = vshrl.u32 %v246, 16
      %v420 = vrot.slane %v418, 4
      %v421 = vor.u32 %v420, %v416
      %v422 = vrot.slane %v421, 4
      %v424 = vshll.u32 %v255, 16
      %v426 = vrot.slane %v424, 5
      %v427 = vsel %vm259, %v422, %v426
      %v429 = vshrl.u32 %v247, 16
      %v431 = vrot.slane %v429, 4
      %v432 = vshll.u32 %v247, 16
      %v434 = vrot.slane %v432, 5
      %v435 = vor.u32 %v431, %v434
      %v436 = vrot.slane %v435, 4
      %v438 = vshll.u32 %v248, 16
      %v440 = vrot.slane %v438, 5
      %v441 = vsel %vm259, %v436, %v440
      %v442 = vshrl.u32 %v248, 16
      %v444 = vrot.slane %v442, 4
      %v445 = vor.u32 %v444, %v440
      %v446 = vrot.slane %v445, 4
      %v448 = vshll.u32 %v256, 16
      %v450 = vrot.slane %v448, 5
      %v451 = vsel %vm259, %v446, %v450
      %v452 = vld [vmem:[%s206] sm:$0xe]
      %v453 = vld [vmem:[%s206 + $0xc] sm:$0xe]
      %v454 = vld [vmem:[%s206 + $0x18] sm:$0xe]
      %v455 = vld [vmem:[%s206 + $0x24] sm:$0xe]
      %v456 = vld [vmem:[%s206 + $0x30] sm:$0xe]
      %v457 = vld [vmem:[%s206 + $0x3c] sm:$0xe]
      %v458 = vld [vmem:[%s206 + $0x48] sm:$0xe]
      %v459 = vld [vmem:[%s206 + $0x54] sm:$0xe]
      %vm484 = vcmask 1042432
      %vm485 = vcmask 1046532
      %vm486 = vmor %vm484, %vm485
      %v487 = vrot.slane %v452, 5
      %v488 = vrot.slane %v487, 4
      %v489 = vrot.slane %v234, 5
      %v490 = vsel %vm486, %v488, %v489
      %v491 = vrot.slane %v489, 4
      %v492 = vrot.slane %v249, 5
      %v493 = vsel %vm486, %v491, %v492
      %v494 = vrot.slane %v453, 5
      %v495 = vrot.slane %v494, 4
      %v496 = vrot.slane %v236, 5
      %v497 = vsel %vm486, %v495, %v496
      %v498 = vrot.slane %v496, 4
      %v499 = vrot.slane %v250, 5
      %v500 = vsel %vm486, %v498, %v499
      %v501 = vrot.slane %v454, 5
      %v502 = vrot.slane %v501, 4
      %v503 = vrot.slane %v238, 5
      %v504 = vsel %vm486, %v502, %v503
      %v505 = vrot.slane %v503, 4
      %v506 = vrot.slane %v251, 5
      %v507 = vsel %vm486, %v505, %v506
      %v508 = vrot.slane %v455, 5
      %v509 = vrot.slane %v508, 4
      %v510 = vrot.slane %v240, 5
      %v511 = vsel %vm486, %v509, %v510
      %v512 = vrot.slane %v510, 4
      %v513 = vrot.slane %v252, 5
      %v514 = vsel %vm486, %v512, %v513
      %v515 = vrot.slane %v456, 5
      %v516 = vrot.slane %v515, 4
      %v517 = vrot.slane %v242, 5
      %v518 = vsel %vm486, %v516, %v517
      %v519 = vrot.slane %v517, 4
      %v520 = vrot.slane %v253, 5
      %v521 = vsel %vm486, %v519, %v520
      %v522 = vrot.slane %v457, 5
      %v523 = vrot.slane %v522, 4
      %v524 = vrot.slane %v244, 5
      %v525 = vsel %vm486, %v523, %v524
      %v526 = vrot.slane %v524, 4
      %v527 = vrot.slane %v254, 5
      %v528 = vsel %vm486, %v526, %v527
      %v529 = vrot.slane %v458, 5
      %v530 = vrot.slane %v529, 4
      %v531 = vrot.slane %v246, 5
      %v532 = vsel %vm486, %v530, %v531
      %v533 = vrot.slane %v531, 4
      %v534 = vrot.slane %v255, 5
      %v535 = vsel %vm486, %v533, %v534
      %v536 = vrot.slane %v459, 5
      %v537 = vrot.slane %v536, 4
      %v538 = vrot.slane %v248, 5
      %v539 = vsel %vm486, %v537, %v538
      %v540 = vrot.slane %v538, 4
      %v541 = vrot.slane %v256, 5
      %v542 = vsel %vm486, %v540, %v541
      %s543 = scalar_lea.vmem %s206, 12
      %v544 = vld [vmem:[%s543] sm:$0xf]
      %v545 = vld [vmem:[%s543 + $0x4] sm:$0xf]
      %v546 = vld [vmem:[%s543 + $0xc] sm:$0xf]
      %v547 = vld [vmem:[%s543 + $0x10] sm:$0xf]
      %v548 = vld [vmem:[%s543 + $0x18] sm:$0xf]
      %v549 = vld [vmem:[%s543 + $0x1c] sm:$0xf]
      %v550 = vld [vmem:[%s543 + $0x24] sm:$0xf]
      %v551 = vld [vmem:[%s543 + $0x28] sm:$0xf]
      %v552 = vld [vmem:[%s543 + $0x30] sm:$0xf]
      %v553 = vld [vmem:[%s543 + $0x34] sm:$0xf]
      %v554 = vld [vmem:[%s543 + $0x3c] sm:$0xf]
      %v555 = vld [vmem:[%s543 + $0x40] sm:$0xf]
      %v556 = vld [vmem:[%s543 + $0x48] sm:$0xf]
      %v557 = vld [vmem:[%s543 + $0x4c] sm:$0xf]
      %v558 = vld [vmem:[%s543 + $0x54] sm:$0xf]
      %v559 = vld [vmem:[%s543 + $0x58] sm:$0xf]
      %v560 = vld [vmem:[%s543 + $0x8] sm:$0x1]
      %v561 = vld [vmem:[%s543 + $0x14] sm:$0x1]
      %v562 = vld [vmem:[%s543 + $0x20] sm:$0x1]
      %v563 = vld [vmem:[%s543 + $0x2c] sm:$0x1]
      %v564 = vld [vmem:[%s543 + $0x38] sm:$0x1]
      %v565 = vld [vmem:[%s543 + $0x44] sm:$0x1]
      %v566 = vld [vmem:[%s543 + $0x50] sm:$0x1]
      %v567 = vld [vmem:[%s543 + $0x5c] sm:$0x1]
      %v569 = vshrl.u32 %v544, 16
      %v571 = vrot.slane %v569, 4
      %v572 = vshll.u32 %v544, 16
      %v574 = vrot.slane %v572, 5
      %v575 = vor.u32 %v571, %v574
      %v576 = vrot.slane %v575, 4
      %v578 = vshll.u32 %v545, 16
      %v580 = vrot.slane %v578, 5
      %v581 = vsel %vm259, %v576, %v580
      %v582 = vshrl.u32 %v545, 16
      %v584 = vrot.slane %v582, 4
      %v585 = vor.u32 %v584, %v580
      %v586 = vrot.slane %v585, 4
      %v588 = vshll.u32 %v560, 16
      %v590 = vrot.slane %v588, 5
      %v591 = vsel %vm259, %v586, %v590
      %v593 = vshrl.u32 %v546, 16
      %v595 = vrot.slane %v593, 4
      %v596 = vshll.u32 %v546, 16
      %v598 = vrot.slane %v596, 5
      %v599 = vor.u32 %v595, %v598
      %v600 = vrot.slane %v599, 4
      %v602 = vshll.u32 %v547, 16
      %v604 = vrot.slane %v602, 5
      %v605 = vsel %vm259, %v600, %v604
      %v606 = vshrl.u32 %v547, 16
      %v608 = vrot.slane %v606, 4
      %v609 = vor.u32 %v608, %v604
      %v610 = vrot.slane %v609, 4
      %v612 = vshll.u32 %v561, 16
      %v614 = vrot.slane %v612, 5
      %v615 = vsel %vm259, %v610, %v614
      %v617 = vshrl.u32 %v548, 16
      %v619 = vrot.slane %v617, 4
      %v620 = vshll.u32 %v548, 16
      %v622 = vrot.slane %v620, 5
      %v623 = vor.u32 %v619, %v622
      %v624 = vrot.slane %v623, 4
      %v626 = vshll.u32 %v549, 16
      %v628 = vrot.slane %v626, 5
      %v629 = vsel %vm259, %v624, %v628
      %v630 = vshrl.u32 %v549, 16
      %v632 = vrot.slane %v630, 4
      %v633 = vor.u32 %v632, %v628
      %v634 = vrot.slane %v633, 4
      %v636 = vshll.u32 %v562, 16
      %v638 = vrot.slane %v636, 5
      %v639 = vsel %vm259, %v634, %v638
      %v641 = vshrl.u32 %v550, 16
      %v643 = vrot.slane %v641, 4
      %v644 = vshll.u32 %v550, 16
      %v646 = vrot.slane %v644, 5
      %v647 = vor.u32 %v643, %v646
      %v648 = vrot.slane %v647, 4
      %v650 = vshll.u32 %v551, 16
      %v652 = vrot.slane %v650, 5
      %v653 = vsel %vm259, %v648, %v652
      %v654 = vshrl.u32 %v551, 16
      %v656 = vrot.slane %v654, 4
      %v657 = vor.u32 %v656, %v652
      %v658 = vrot.slane %v657, 4
      %v660 = vshll.u32 %v563, 16
      %v662 = vrot.slane %v660, 5
      %v663 = vsel %vm259, %v658, %v662
      %v665 = vshrl.u32 %v552, 16
      %v667 = vrot.slane %v665, 4
      %v668 = vshll.u32 %v552, 16
      %v670 = vrot.slane %v668, 5
      %v671 = vor.u32 %v667, %v670
      %v672 = vrot.slane %v671, 4
      %v674 = vshll.u32 %v553, 16
      %v676 = vrot.slane %v674, 5
      %v677 = vsel %vm259, %v672, %v676
      %v678 = vshrl.u32 %v553, 16
      %v680 = vrot.slane %v678, 4
      %v681 = vor.u32 %v680, %v676
      %v682 = vrot.slane %v681, 4
      %v684 = vshll.u32 %v564, 16
      %v686 = vrot.slane %v684, 5
      %v687 = vsel %vm259, %v682, %v686
      %v689 = vshrl.u32 %v554, 16
      %v691 = vrot.slane %v689, 4
      %v692 = vshll.u32 %v554, 16
      %v694 = vrot.slane %v692, 5
      %v695 = vor.u32 %v691, %v694
      %v696 = vrot.slane %v695, 4
      %v698 = vshll.u32 %v555, 16
      %v700 = vrot.slane %v698, 5
      %v701 = vsel %vm259, %v696, %v700
      %v702 = vshrl.u32 %v555, 16
      %v704 = vrot.slane %v702, 4
      %v705 = vor.u32 %v704, %v700
      %v706 = vrot.slane %v705, 4
      %v708 = vshll.u32 %v565, 16
      %v710 = vrot.slane %v708, 5
      %v711 = vsel %vm259, %v706, %v710
      %v713 = vshrl.u32 %v556, 16
      %v715 = vrot.slane %v713, 4
      %v716 = vshll.u32 %v556, 16
      %v718 = vrot.slane %v716, 5
      %v719 = vor.u32 %v715, %v718
      %v720 = vrot.slane %v719, 4
      %v722 = vshll.u32 %v557, 16
      %v724 = vrot.slane %v722, 5
      %v725 = vsel %vm259, %v720, %v724
      %v726 = vshrl.u32 %v557, 16
      %v728 = vrot.slane %v726, 4
      %v729 = vor.u32 %v728, %v724
      %v730 = vrot.slane %v729, 4
      %v732 = vshll.u32 %v566, 16
      %v734 = vrot.slane %v732, 5
      %v735 = vsel %vm259, %v730, %v734
      %v737 = vshrl.u32 %v558, 16
      %v739 = vrot.slane %v737, 4
      %v740 = vshll.u32 %v558, 16
      %v742 = vrot.slane %v740, 5
      %v743 = vor.u32 %v739, %v742
      %v744 = vrot.slane %v743, 4
      %v746 = vshll.u32 %v559, 16
      %v748 = vrot.slane %v746, 5
      %v749 = vsel %vm259, %v744, %v748
      %v750 = vshrl.u32 %v559, 16
      %v752 = vrot.slane %v750, 4
      %v753 = vor.u32 %v752, %v748
      %v754 = vrot.slane %v753, 4
      %v756 = vshll.u32 %v567, 16
      %v758 = vrot.slane %v756, 5
      %v759 = vsel %vm259, %v754, %v758
      %v760 = vld [vmem:[%s543] sm:$0xe]
      %v761 = vld [vmem:[%s543 + $0xc] sm:$0xe]
      %v762 = vld [vmem:[%s543 + $0x18] sm:$0xe]
      %v763 = vld [vmem:[%s543 + $0x24] sm:$0xe]
      %v764 = vld [vmem:[%s543 + $0x30] sm:$0xe]
      %v765 = vld [vmem:[%s543 + $0x3c] sm:$0xe]
      %v766 = vld [vmem:[%s543 + $0x48] sm:$0xe]
      %v767 = vld [vmem:[%s543 + $0x54] sm:$0xe]
      %v792 = vrot.slane %v760, 5
      %v793 = vrot.slane %v792, 4
      %v794 = vrot.slane %v545, 5
      %v795 = vsel %vm486, %v793, %v794
      %v796 = vrot.slane %v794, 4
      %v797 = vrot.slane %v560, 5
      %v798 = vsel %vm486, %v796, %v797
      %v799 = vrot.slane %v761, 5
      %v800 = vrot.slane %v799, 4
      %v801 = vrot.slane %v547, 5
      %v802 = vsel %vm486, %v800, %v801
      %v803 = vrot.slane %v801, 4
      %v804 = vrot.slane %v561, 5
      %v805 = vsel %vm486, %v803, %v804
      %v806 = vrot.slane %v762, 5
      %v807 = vrot.slane %v806, 4
      %v808 = vrot.slane %v549, 5
      %v809 = vsel %vm486, %v807, %v808
      %v810 = vrot.slane %v808, 4
      %v811 = vrot.slane %v562, 5
      %v812 = vsel %vm486, %v810, %v811
      %v813 = vrot.slane %v763, 5
      %v814 = vrot.slane %v813, 4
      %v815 = vrot.slane %v551, 5
      %v816 = vsel %vm486, %v814, %v815
      %v817 = vrot.slane %v815, 4
      %v818 = vrot.slane %v563, 5
      %v819 = vsel %vm486, %v817, %v818
      %v820 = vrot.slane %v764, 5
      %v821 = vrot.slane %v820, 4
      %v822 = vrot.slane %v553, 5
      %v823 = vsel %vm486, %v821, %v822
      %v824 = vrot.slane %v822, 4
      %v825 = vrot.slane %v564, 5
      %v826 = vsel %vm486, %v824, %v825
      %v827 = vrot.slane %v765, 5
      %v828 = vrot.slane %v827, 4
      %v829 = vrot.slane %v555, 5
      %v830 = vsel %vm486, %v828, %v829
      %v831 = vrot.slane %v829, 4
      %v832 = vrot.slane %v565, 5
      %v833 = vsel %vm486, %v831, %v832
      %v834 = vrot.slane %v766, 5
      %v835 = vrot.slane %v834, 4
      %v836 = vrot.slane %v557, 5
      %v837 = vsel %vm486, %v835, %v836
      %v838 = vrot.slane %v836, 4
      %v839 = vrot.slane %v566, 5
      %v840 = vsel %vm486, %v838, %v839
      %v841 = vrot.slane %v767, 5
      %v842 = vrot.slane %v841, 4
      %v843 = vrot.slane %v559, 5
      %v844 = vsel %vm486, %v842, %v843
      %v845 = vrot.slane %v843, 4
      %v846 = vrot.slane %v567, 5
      %v847 = vsel %vm486, %v845, %v846
      %s848 = scalar_lea.vmem %s206, 24
      %v849 = vld [vmem:[%s848] sm:$0xf]
      %v850 = vld [vmem:[%s848 + $0x4] sm:$0xf]
      %v851 = vld [vmem:[%s848 + $0xc] sm:$0xf]
      %v852 = vld [vmem:[%s848 + $0x10] sm:$0xf]
      %v853 = vld [vmem:[%s848 + $0x18] sm:$0xf]
      %v854 = vld [vmem:[%s848 + $0x1c] sm:$0xf]
      %v855 = vld [vmem:[%s848 + $0x24] sm:$0xf]
      %v856 = vld [vmem:[%s848 + $0x28] sm:$0xf]
      %v857 = vld [vmem:[%s848 + $0x30] sm:$0xf]
      %v858 = vld [vmem:[%s848 + $0x34] sm:$0xf]
      %v859 = vld [vmem:[%s848 + $0x3c] sm:$0xf]
      %v860 = vld [vmem:[%s848 + $0x40] sm:$0xf]
      %v861 = vld [vmem:[%s848 + $0x48] sm:$0xf]
      %v862 = vld [vmem:[%s848 + $0x4c] sm:$0xf]
      %v863 = vld [vmem:[%s848 + $0x54] sm:$0xf]
      %v864 = vld [vmem:[%s848 + $0x58] sm:$0xf]
      %v865 = vld [vmem:[%s848 + $0x8] sm:$0x1]
      %v866 = vld [vmem:[%s848 + $0x14] sm:$0x1]
      %v867 = vld [vmem:[%s848 + $0x20] sm:$0x1]
      %v868 = vld [vmem:[%s848 + $0x2c] sm:$0x1]
      %v869 = vld [vmem:[%s848 + $0x38] sm:$0x1]
      %v870 = vld [vmem:[%s848 + $0x44] sm:$0x1]
      %v871 = vld [vmem:[%s848 + $0x50] sm:$0x1]
      %v872 = vld [vmem:[%s848 + $0x5c] sm:$0x1]
      %v874 = vshrl.u32 %v849, 16
      %v876 = vrot.slane %v874, 4
      %v877 = vshll.u32 %v849, 16
      %v879 = vrot.slane %v877, 5
      %v880 = vor.u32 %v876, %v879
      %v881 = vrot.slane %v880, 4
      %v883 = vshll.u32 %v850, 16
      %v885 = vrot.slane %v883, 5
      %v886 = vsel %vm259, %v881, %v885
      %v887 = vshrl.u32 %v850, 16
      %v889 = vrot.slane %v887, 4
      %v890 = vor.u32 %v889, %v885
      %v891 = vrot.slane %v890, 4
      %v893 = vshll.u32 %v865, 16
      %v895 = vrot.slane %v893, 5
      %v896 = vsel %vm259, %v891, %v895
      %v898 = vshrl.u32 %v851, 16
      %v900 = vrot.slane %v898, 4
      %v901 = vshll.u32 %v851, 16
      %v903 = vrot.slane %v901, 5
      %v904 = vor.u32 %v900, %v903
      %v905 = vrot.slane %v904, 4
      %v907 = vshll.u32 %v852, 16
      %v909 = vrot.slane %v907, 5
      %v910 = vsel %vm259, %v905, %v909
      %v911 = vshrl.u32 %v852, 16
      %v913 = vrot.slane %v911, 4
      %v914 = vor.u32 %v913, %v909
      %v915 = vrot.slane %v914, 4
      %v917 = vshll.u32 %v866, 16
      %v919 = vrot.slane %v917, 5
      %v920 = vsel %vm259, %v915, %v919
      %v922 = vshrl.u32 %v853, 16
      %v924 = vrot.slane %v922, 4
      %v925 = vshll.u32 %v853, 16
      %v927 = vrot.slane %v925, 5
      %v928 = vor.u32 %v924, %v927
      %v929 = vrot.slane %v928, 4
      %v931 = vshll.u32 %v854, 16
      %v933 = vrot.slane %v931, 5
      %v934 = vsel %vm259, %v929, %v933
      %v935 = vshrl.u32 %v854, 16
      %v937 = vrot.slane %v935, 4
      %v938 = vor.u32 %v937, %v933
      %v939 = vrot.slane %v938, 4
      %v941 = vshll.u32 %v867, 16
      %v943 = vrot.slane %v941, 5
      %v944 = vsel %vm259, %v939, %v943
      %v946 = vshrl.u32 %v855, 16
      %v948 = vrot.slane %v946, 4
      %v949 = vshll.u32 %v855, 16
      %v951 = vrot.slane %v949, 5
      %v952 = vor.u32 %v948, %v951
      %v953 = vrot.slane %v952, 4
      %v955 = vshll.u32 %v856, 16
      %v957 = vrot.slane %v955, 5
      %v958 = vsel %vm259, %v953, %v957
      %v959 = vshrl.u32 %v856, 16
      %v961 = vrot.slane %v959, 4
      %v962 = vor.u32 %v961, %v957
      %v963 = vrot.slane %v962, 4
      %v965 = vshll.u32 %v868, 16
      %v967 = vrot.slane %v965, 5
      %v968 = vsel %vm259, %v963, %v967
      %v970 = vshrl.u32 %v857, 16
      %v972 = vrot.slane %v970, 4
      %v973 = vshll.u32 %v857, 16
      %v975 = vrot.slane %v973, 5
      %v976 = vor.u32 %v972, %v975
      %v977 = vrot.slane %v976, 4
      %v979 = vshll.u32 %v858, 16
      %v981 = vrot.slane %v979, 5
      %v982 = vsel %vm259, %v977, %v981
      %v983 = vshrl.u32 %v858, 16
      %v985 = vrot.slane %v983, 4
      %v986 = vor.u32 %v985, %v981
      %v987 = vrot.slane %v986, 4
      %v989 = vshll.u32 %v869, 16
      %v991 = vrot.slane %v989, 5
      %v992 = vsel %vm259, %v987, %v991
      %v994 = vshrl.u32 %v859, 16
      %v996 = vrot.slane %v994, 4
      %v997 = vshll.u32 %v859, 16
      %v999 = vrot.slane %v997, 5
      %v1000 = vor.u32 %v996, %v999
      %v1001 = vrot.slane %v1000, 4
      %v1003 = vshll.u32 %v860, 16
      %v1005 = vrot.slane %v1003, 5
      %v1006 = vsel %vm259, %v1001, %v1005
      %v1007 = vshrl.u32 %v860, 16
      %v1009 = vrot.slane %v1007, 4
      %v1010 = vor.u32 %v1009, %v1005
      %v1011 = vrot.slane %v1010, 4
      %v1013 = vshll.u32 %v870, 16
      %v1015 = vrot.slane %v1013, 5
      %v1016 = vsel %vm259, %v1011, %v1015
      %v1018 = vshrl.u32 %v861, 16
      %v1020 = vrot.slane %v1018, 4
      %v1021 = vshll.u32 %v861, 16
      %v1023 = vrot.slane %v1021, 5
      %v1024 = vor.u32 %v1020, %v1023
      %v1025 = vrot.slane %v1024, 4
      %v1027 = vshll.u32 %v862, 16
      %v1029 = vrot.slane %v1027, 5
      %v1030 = vsel %vm259, %v1025, %v1029
      %v1031 = vshrl.u32 %v862, 16
      %v1033 = vrot.slane %v1031, 4
      %v1034 = vor.u32 %v1033, %v1029
      %v1035 = vrot.slane %v1034, 4
      %v1037 = vshll.u32 %v871, 16
      %v1039 = vrot.slane %v1037, 5
      %v1040 = vsel %vm259, %v1035, %v1039
      %v1042 = vshrl.u32 %v863, 16
      %v1044 = vrot.slane %v1042, 4
      %v1045 = vshll.u32 %v863, 16
      %v1047 = vrot.slane %v1045, 5
      %v1048 = vor.u32 %v1044, %v1047
      %v1049 = vrot.slane %v1048, 4
      %v1051 = vshll.u32 %v864, 16
      %v1053 = vrot.slane %v1051, 5
      %v1054 = vsel %vm259, %v1049, %v1053
      %v1055 = vshrl.u32 %v864, 16
      %v1057 = vrot.slane %v1055, 4
      %v1058 = vor.u32 %v1057, %v1053
      %v1059 = vrot.slane %v1058, 4
      %v1061 = vshll.u32 %v872, 16
      %v1063 = vrot.slane %v1061, 5
      %v1064 = vsel %vm259, %v1059, %v1063
      %v1065 = vld [vmem:[%s848] sm:$0xe]
      %v1066 = vld [vmem:[%s848 + $0xc] sm:$0xe]
      %v1067 = vld [vmem:[%s848 + $0x18] sm:$0xe]
      %v1068 = vld [vmem:[%s848 + $0x24] sm:$0xe]
      %v1069 = vld [vmem:[%s848 + $0x30] sm:$0xe]
      %v1070 = vld [vmem:[%s848 + $0x3c] sm:$0xe]
      %v1071 = vld [vmem:[%s848 + $0x48] sm:$0xe]
      %v1072 = vld [vmem:[%s848 + $0x54] sm:$0xe]
      %v1097 = vrot.slane %v1065, 5
      %v1098 = vrot.slane %v1097, 4
      %v1099 = vrot.slane %v850, 5
      %v1100 = vsel %vm486, %v1098, %v1099
      %v1101 = vrot.slane %v1099, 4
      %v1102 = vrot.slane %v865, 5
      %v1103 = vsel %vm486, %v1101, %v1102
      %v1104 = vrot.slane %v1066, 5
      %v1105 = vrot.slane %v1104, 4
      %v1106 = vrot.slane %v852, 5
      %v1107 = vsel %vm486, %v1105, %v1106
      %v1108 = vrot.slane %v1106, 4
      %v1109 = vrot.slane %v866, 5
      %v1110 = vsel %vm486, %v1108, %v1109
      %v1111 = vrot.slane %v1067, 5
      %v1112 = vrot.slane %v1111, 4
      %v1113 = vrot.slane %v854, 5
      %v1114 = vsel %vm486, %v1112, %v1113
      %v1115 = vrot.slane %v1113, 4
      %v1116 = vrot.slane %v867, 5
      %v1117 = vsel %vm486, %v1115, %v1116
      %v1118 = vrot.slane %v1068, 5
      %v1119 = vrot.slane %v1118, 4
      %v1120 = vrot.slane %v856, 5
      %v1121 = vsel %vm486, %v1119, %v1120
      %v1122 = vrot.slane %v1120, 4
      %v1123 = vrot.slane %v868, 5
      %v1124 = vsel %vm486, %v1122, %v1123
      %v1125 = vrot.slane %v1069, 5
      %v1126 = vrot.slane %v1125, 4
      %v1127 = vrot.slane %v858, 5
      %v1128 = vsel %vm486, %v1126, %v1127
      %v1129 = vrot.slane %v1127, 4
      %v1130 = vrot.slane %v869, 5
      %v1131 = vsel %vm486, %v1129, %v1130
      %v1132 = vrot.slane %v1070, 5
      %v1133 = vrot.slane %v1132, 4
      %v1134 = vrot.slane %v860, 5
      %v1135 = vsel %vm486, %v1133, %v1134
      %v1136 = vrot.slane %v1134, 4
      %v1137 = vrot.slane %v870, 5
      %v1138 = vsel %vm486, %v1136, %v1137
      %v1139 = vrot.slane %v1071, 5
      %v1140 = vrot.slane %v1139, 4
      %v1141 = vrot.slane %v862, 5
      %v1142 = vsel %vm486, %v1140, %v1141
      %v1143 = vrot.slane %v1141, 4
      %v1144 = vrot.slane %v871, 5
      %v1145 = vsel %vm486, %v1143, %v1144
      %v1146 = vrot.slane %v1072, 5
      %v1147 = vrot.slane %v1146, 4
      %v1148 = vrot.slane %v864, 5
      %v1149 = vsel %vm486, %v1147, %v1148
      %v1150 = vrot.slane %v1148, 4
      %v1151 = vrot.slane %v872, 5
      %v1152 = vsel %vm486, %v1150, %v1151
      %v1161 = vunpack.c.l.b16 %v233
      %v1162 = vunpack.c.l.b16 %v234
      %v1163 = vunpack.c.l.b16 %v235
      %v1164 = vunpack.c.l.b16 %v236
      %v1165 = vunpack.c.l.b16 %v237
      %v1166 = vunpack.c.l.b16 %v238
      %v1167 = vunpack.c.l.b16 %v239
      %v1168 = vunpack.c.l.b16 %v240
      %v1169 = vunpack.c.l.b16 %v241
      %v1170 = vunpack.c.l.b16 %v242
      %v1171 = vunpack.c.l.b16 %v243
      %v1172 = vunpack.c.l.b16 %v244
      %v1173 = vunpack.c.l.b16 %v245
      %v1174 = vunpack.c.l.b16 %v246
      %v1175 = vunpack.c.l.b16 %v247
      %v1176 = vunpack.c.l.b16 %v248
      %v1177 = vpack.c.b16 %v1162, %v1161
      %v1178 = vpack.c.b16 %v1164, %v1163
      %v1179 = vpack.c.b16 %v1166, %v1165
      %v1180 = vpack.c.b16 %v1168, %v1167
      %v1181 = vpack.c.b16 %v1170, %v1169
      %v1182 = vpack.c.b16 %v1172, %v1171
      %v1183 = vpack.c.b16 %v1174, %v1173
      %v1184 = vpack.c.b16 %v1176, %v1175
      %v1185 = vunpack.c.l.b16 %v273
      %v1186 = vunpack.c.l.b16 %v283
      %v1187 = vunpack.c.l.b16 %v297
      %v1188 = vunpack.c.l.b16 %v307
      %v1189 = vunpack.c.l.b16 %v321
      %v1190 = vunpack.c.l.b16 %v331
      %v1191 = vunpack.c.l.b16 %v345
      %v1192 = vunpack.c.l.b16 %v355
      %v1193 = vunpack.c.l.b16 %v369
      %v1194 = vunpack.c.l.b16 %v379
      %v1195 = vunpack.c.l.b16 %v393
      %v1196 = vunpack.c.l.b16 %v403
      %v1197 = vunpack.c.l.b16 %v417
      %v1198 = vunpack.c.l.b16 %v427
      %v1199 = vunpack.c.l.b16 %v441
      %v1200 = vunpack.c.l.b16 %v451
      %v1201 = vpack.c.b16 %v1186, %v1185
      %v1202 = vpack.c.b16 %v1188, %v1187
      %v1203 = vpack.c.b16 %v1190, %v1189
      %v1204 = vpack.c.b16 %v1192, %v1191
      %v1205 = vpack.c.b16 %v1194, %v1193
      %v1206 = vpack.c.b16 %v1196, %v1195
      %v1207 = vpack.c.b16 %v1198, %v1197
      %v1208 = vpack.c.b16 %v1200, %v1199
      %1209 = vrot.lane.b32.xlu0 %v1201, 8
      %v1210 = vpop.permute.xlu0 %1209
      %1211 = vrot.lane.b32.xlu0 %v1202, 8
      %v1212 = vpop.permute.xlu0 %1211
      %1213 = vrot.lane.b32.xlu0 %v1203, 8
      %v1214 = vpop.permute.xlu0 %1213
      %1215 = vrot.lane.b32.xlu0 %v1204, 8
      %v1216 = vpop.permute.xlu0 %1215
      %1217 = vrot.lane.b32.xlu0 %v1205, 8
      %v1218 = vpop.permute.xlu0 %1217
      %1219 = vrot.lane.b32.xlu0 %v1206, 8
      %v1220 = vpop.permute.xlu0 %1219
      %1221 = vrot.lane.b32.xlu0 %v1207, 8
      %v1222 = vpop.permute.xlu0 %1221
      %1223 = vrot.lane.b32.xlu0 %v1208, 8
      %v1224 = vpop.permute.xlu0 %1223
      %v1225 = vunpack.c.l.b16 %v490
      %v1226 = vunpack.c.l.b16 %v493
      %v1227 = vunpack.c.l.b16 %v497
      %v1228 = vunpack.c.l.b16 %v500
      %v1229 = vunpack.c.l.b16 %v504
      %v1230 = vunpack.c.l.b16 %v507
      %v1231 = vunpack.c.l.b16 %v511
      %v1232 = vunpack.c.l.b16 %v514
      %v1233 = vunpack.c.l.b16 %v518
      %v1234 = vunpack.c.l.b16 %v521
      %v1235 = vunpack.c.l.b16 %v525
      %v1236 = vunpack.c.l.b16 %v528
      %v1237 = vunpack.c.l.b16 %v532
      %v1238 = vunpack.c.l.b16 %v535
      %v1239 = vunpack.c.l.b16 %v539
      %v1240 = vunpack.c.l.b16 %v542
      %v1241 = vpack.c.b16 %v1226, %v1225
      %v1242 = vpack.c.b16 %v1228, %v1227
      %v1243 = vpack.c.b16 %v1230, %v1229
      %v1244 = vpack.c.b16 %v1232, %v1231
      %v1245 = vpack.c.b16 %v1234, %v1233
      %v1246 = vpack.c.b16 %v1236, %v1235
      %v1247 = vpack.c.b16 %v1238, %v1237
      %v1248 = vpack.c.b16 %v1240, %v1239
      %1249 = vrot.lane.b32.xlu0 %v1241, 16
      %v1250 = vpop.permute.xlu0 %1249
      %1251 = vrot.lane.b32.xlu0 %v1242, 16
      %v1252 = vpop.permute.xlu0 %1251
      %1253 = vrot.lane.b32.xlu0 %v1243, 16
      %v1254 = vpop.permute.xlu0 %1253
      %1255 = vrot.lane.b32.xlu0 %v1244, 16
      %v1256 = vpop.permute.xlu0 %1255
      %1257 = vrot.lane.b32.xlu0 %v1245, 16
      %v1258 = vpop.permute.xlu0 %1257
      %1259 = vrot.lane.b32.xlu0 %v1246, 16
      %v1260 = vpop.permute.xlu0 %1259
      %1261 = vrot.lane.b32.xlu0 %v1247, 16
      %v1262 = vpop.permute.xlu0 %1261
      %1263 = vrot.lane.b32.xlu0 %v1248, 16
      %v1264 = vpop.permute.xlu0 %1263
      %v1273 = vunpack.c.l.b16 %v544
      %v1274 = vunpack.c.l.b16 %v545
      %v1275 = vunpack.c.l.b16 %v546
      %v1276 = vunpack.c.l.b16 %v547
      %v1277 = vunpack.c.l.b16 %v548
      %v1278 = vunpack.c.l.b16 %v549
      %v1279 = vunpack.c.l.b16 %v550
      %v1280 = vunpack.c.l.b16 %v551
      %v1281 = vunpack.c.l.b16 %v552
      %v1282 = vunpack.c.l.b16 %v553
      %v1283 = vunpack.c.l.b16 %v554
      %v1284 = vunpack.c.l.b16 %v555
      %v1285 = vunpack.c.l.b16 %v556
      %v1286 = vunpack.c.l.b16 %v557
      %v1287 = vunpack.c.l.b16 %v558
      %v1288 = vunpack.c.l.b16 %v559
      %v1289 = vpack.c.b16 %v1274, %v1273
      %v1290 = vpack.c.b16 %v1276, %v1275
      %v1291 = vpack.c.b16 %v1278, %v1277
      %v1292 = vpack.c.b16 %v1280, %v1279
      %v1293 = vpack.c.b16 %v1282, %v1281
      %v1294 = vpack.c.b16 %v1284, %v1283
      %v1295 = vpack.c.b16 %v1286, %v1285
      %v1296 = vpack.c.b16 %v1288, %v1287
      %1297 = vrot.lane.b32.xlu0 %v1289, 24
      %v1298 = vpop.permute.xlu0 %1297
      %1299 = vrot.lane.b32.xlu0 %v1290, 24
      %v1300 = vpop.permute.xlu0 %1299
      %1301 = vrot.lane.b32.xlu0 %v1291, 24
      %v1302 = vpop.permute.xlu0 %1301
      %1303 = vrot.lane.b32.xlu0 %v1292, 24
      %v1304 = vpop.permute.xlu0 %1303
      %1305 = vrot.lane.b32.xlu0 %v1293, 24
      %v1306 = vpop.permute.xlu0 %1305
      %1307 = vrot.lane.b32.xlu0 %v1294, 24
      %v1308 = vpop.permute.xlu0 %1307
      %1309 = vrot.lane.b32.xlu0 %v1295, 24
      %v1310 = vpop.permute.xlu0 %1309
      %1311 = vrot.lane.b32.xlu0 %v1296, 24
      %v1312 = vpop.permute.xlu0 %1311
      %v1313 = vunpack.c.l.b16 %v581
      %v1314 = vunpack.c.l.b16 %v591
      %v1315 = vunpack.c.l.b16 %v605
      %v1316 = vunpack.c.l.b16 %v615
      %v1317 = vunpack.c.l.b16 %v629
      %v1318 = vunpack.c.l.b16 %v639
      %v1319 = vunpack.c.l.b16 %v653
      %v1320 = vunpack.c.l.b16 %v663
      %v1321 = vunpack.c.l.b16 %v677
      %v1322 = vunpack.c.l.b16 %v687
      %v1323 = vunpack.c.l.b16 %v701
      %v1324 = vunpack.c.l.b16 %v711
      %v1325 = vunpack.c.l.b16 %v725
      %v1326 = vunpack.c.l.b16 %v735
      %v1327 = vunpack.c.l.b16 %v749
      %v1328 = vunpack.c.l.b16 %v759
      %v1329 = vpack.c.b16 %v1314, %v1313
      %v1330 = vpack.c.b16 %v1316, %v1315
      %v1331 = vpack.c.b16 %v1318, %v1317
      %v1332 = vpack.c.b16 %v1320, %v1319
      %v1333 = vpack.c.b16 %v1322, %v1321
      %v1334 = vpack.c.b16 %v1324, %v1323
      %v1335 = vpack.c.b16 %v1326, %v1325
      %v1336 = vpack.c.b16 %v1328, %v1327
      %1337 = vrot.lane.b32.xlu0 %v1329, 32
      %v1338 = vpop.permute.xlu0 %1337
      %1339 = vrot.lane.b32.xlu0 %v1330, 32
      %v1340 = vpop.permute.xlu0 %1339
      %1341 = vrot.lane.b32.xlu0 %v1331, 32
      %v1342 = vpop.permute.xlu0 %1341
      %1343 = vrot.lane.b32.xlu0 %v1332, 32
      %v1344 = vpop.permute.xlu0 %1343
      %1345 = vrot.lane.b32.xlu0 %v1333, 32
      %v1346 = vpop.permute.xlu0 %1345
      %1347 = vrot.lane.b32.xlu0 %v1334, 32
      %v1348 = vpop.permute.xlu0 %1347
      %1349 = vrot.lane.b32.xlu0 %v1335, 32
      %v1350 = vpop.permute.xlu0 %1349
      %1351 = vrot.lane.b32.xlu0 %v1336, 32
      %v1352 = vpop.permute.xlu0 %1351
      %v1353 = vunpack.c.l.b16 %v795
      %v1354 = vunpack.c.l.b16 %v798
      %v1355 = vunpack.c.l.b16 %v802
      %v1356 = vunpack.c.l.b16 %v805
      %v1357 = vunpack.c.l.b16 %v809
      %v1358 = vunpack.c.l.b16 %v812
      %v1359 = vunpack.c.l.b16 %v816
      %v1360 = vunpack.c.l.b16 %v819
      %v1361 = vunpack.c.l.b16 %v823
      %v1362 = vunpack.c.l.b16 %v826
      %v1363 = vunpack.c.l.b16 %v830
      %v1364 = vunpack.c.l.b16 %v833
      %v1365 = vunpack.c.l.b16 %v837
      %v1366 = vunpack.c.l.b16 %v840
      %v1367 = vunpack.c.l.b16 %v844
      %v1368 = vunpack.c.l.b16 %v847
      %v1369 = vpack.c.b16 %v1354, %v1353
      %v1370 = vpack.c.b16 %v1356, %v1355
      %v1371 = vpack.c.b16 %v1358, %v1357
      %v1372 = vpack.c.b16 %v1360, %v1359
      %v1373 = vpack.c.b16 %v1362, %v1361
      %v1374 = vpack.c.b16 %v1364, %v1363
      %v1375 = vpack.c.b16 %v1366, %v1365
      %v1376 = vpack.c.b16 %v1368, %v1367
      %1377 = vrot.lane.b32.xlu0 %v1369, 40
      %v1378 = vpop.permute.xlu0 %1377
      %1379 = vrot.lane.b32.xlu0 %v1370, 40
      %v1380 = vpop.permute.xlu0 %1379
      %1381 = vrot.lane.b32.xlu0 %v1371, 40
      %v1382 = vpop.permute.xlu0 %1381
      %1383 = vrot.lane.b32.xlu0 %v1372, 40
      %v1384 = vpop.permute.xlu0 %1383
      %1385 = vrot.lane.b32.xlu0 %v1373, 40
      %v1386 = vpop.permute.xlu0 %1385
      %1387 = vrot.lane.b32.xlu0 %v1374, 40
      %v1388 = vpop.permute.xlu0 %1387
      %1389 = vrot.lane.b32.xlu0 %v1375, 40
      %v1390 = vpop.permute.xlu0 %1389
      %1391 = vrot.lane.b32.xlu0 %v1376, 40
      %v1392 = vpop.permute.xlu0 %1391
      %v1401 = vunpack.c.l.b16 %v849
      %v1402 = vunpack.c.l.b16 %v850
      %v1403 = vunpack.c.l.b16 %v851
      %v1404 = vunpack.c.l.b16 %v852
      %v1405 = vunpack.c.l.b16 %v853
      %v1406 = vunpack.c.l.b16 %v854
      %v1407 = vunpack.c.l.b16 %v855
      %v1408 = vunpack.c.l.b16 %v856
      %v1409 = vunpack.c.l.b16 %v857
      %v1410 = vunpack.c.l.b16 %v858
      %v1411 = vunpack.c.l.b16 %v859
      %v1412 = vunpack.c.l.b16 %v860
      %v1413 = vunpack.c.l.b16 %v861
      %v1414 = vunpack.c.l.b16 %v862
      %v1415 = vunpack.c.l.b16 %v863
      %v1416 = vunpack.c.l.b16 %v864
      %v1417 = vpack.c.b16 %v1402, %v1401
      %v1418 = vpack.c.b16 %v1404, %v1403
      %v1419 = vpack.c.b16 %v1406, %v1405
      %v1420 = vpack.c.b16 %v1408, %v1407
      %v1421 = vpack.c.b16 %v1410, %v1409
      %v1422 = vpack.c.b16 %v1412, %v1411
      %v1423 = vpack.c.b16 %v1414, %v1413
      %v1424 = vpack.c.b16 %v1416, %v1415
      %1425 = vrot.lane.b32.xlu0 %v1417, 48
      %v1426 = vpop.permute.xlu0 %1425
      %1427 = vrot.lane.b32.xlu0 %v1418, 48
      %v1428 = vpop.permute.xlu0 %1427
      %1429 = vrot.lane.b32.xlu0 %v1419, 48
      %v1430 = vpop.permute.xlu0 %1429
      %1431 = vrot.lane.b32.xlu0 %v1420, 48
      %v1432 = vpop.permute.xlu0 %1431
      %1433 = vrot.lane.b32.xlu0 %v1421, 48
      %v1434 = vpop.permute.xlu0 %1433
      %1435 = vrot.lane.b32.xlu0 %v1422, 48
      %v1436 = vpop.permute.xlu0 %1435
      %1437 = vrot.lane.b32.xlu0 %v1423, 48
      %v1438 = vpop.permute.xlu0 %1437
      %1439 = vrot.lane.b32.xlu0 %v1424, 48
      %v1440 = vpop.permute.xlu0 %1439
      %v1441 = vunpack.c.l.b16 %v886
      %v1442 = vunpack.c.l.b16 %v896
      %v1443 = vunpack.c.l.b16 %v910
      %v1444 = vunpack.c.l.b16 %v920
      %v1445 = vunpack.c.l.b16 %v934
      %v1446 = vunpack.c.l.b16 %v944
      %v1447 = vunpack.c.l.b16 %v958
      %v1448 = vunpack.c.l.b16 %v968
      %v1449 = vunpack.c.l.b16 %v982
      %v1450 = vunpack.c.l.b16 %v992
      %v1451 = vunpack.c.l.b16 %v1006
      %v1452 = vunpack.c.l.b16 %v1016
      %v1453 = vunpack.c.l.b16 %v1030
      %v1454 = vunpack.c.l.b16 %v1040
      %v1455 = vunpack.c.l.b16 %v1054
      %v1456 = vunpack.c.l.b16 %v1064
      %v1457 = vpack.c.b16 %v1442, %v1441
      %v1458 = vpack.c.b16 %v1444, %v1443
      %v1459 = vpack.c.b16 %v1446, %v1445
      %v1460 = vpack.c.b16 %v1448, %v1447
      %v1461 = vpack.c.b16 %v1450, %v1449
      %v1462 = vpack.c.b16 %v1452, %v1451
      %v1463 = vpack.c.b16 %v1454, %v1453
      %v1464 = vpack.c.b16 %v1456, %v1455
      %1465 = vrot.lane.b32.xlu0 %v1457, 56
      %v1466 = vpop.permute.xlu0 %1465
      %1467 = vrot.lane.b32.xlu0 %v1458, 56
      %v1468 = vpop.permute.xlu0 %1467
      %1469 = vrot.lane.b32.xlu0 %v1459, 56
      %v1470 = vpop.permute.xlu0 %1469
      %1471 = vrot.lane.b32.xlu0 %v1460, 56
      %v1472 = vpop.permute.xlu0 %1471
      %1473 = vrot.lane.b32.xlu0 %v1461, 56
      %v1474 = vpop.permute.xlu0 %1473
      %1475 = vrot.lane.b32.xlu0 %v1462, 56
      %v1476 = vpop.permute.xlu0 %1475
      %1477 = vrot.lane.b32.xlu0 %v1463, 56
      %v1478 = vpop.permute.xlu0 %1477
      %1479 = vrot.lane.b32.xlu0 %v1464, 56
      %v1480 = vpop.permute.xlu0 %1479
      %v1481 = vunpack.c.l.b16 %v1100
      %v1482 = vunpack.c.l.b16 %v1103
      %v1483 = vunpack.c.l.b16 %v1107
      %v1484 = vunpack.c.l.b16 %v1110
      %v1485 = vunpack.c.l.b16 %v1114
      %v1486 = vunpack.c.l.b16 %v1117
      %v1487 = vunpack.c.l.b16 %v1121
      %v1488 = vunpack.c.l.b16 %v1124
      %v1489 = vunpack.c.l.b16 %v1128
      %v1490 = vunpack.c.l.b16 %v1131
      %v1491 = vunpack.c.l.b16 %v1135
      %v1492 = vunpack.c.l.b16 %v1138
      %v1493 = vunpack.c.l.b16 %v1142
      %v1494 = vunpack.c.l.b16 %v1145
      %v1495 = vunpack.c.l.b16 %v1149
      %v1496 = vunpack.c.l.b16 %v1152
      %v1497 = vpack.c.b16 %v1482, %v1481
      %v1498 = vpack.c.b16 %v1484, %v1483
      %v1499 = vpack.c.b16 %v1486, %v1485
      %v1500 = vpack.c.b16 %v1488, %v1487
      %v1501 = vpack.c.b16 %v1490, %v1489
      %v1502 = vpack.c.b16 %v1492, %v1491
      %v1503 = vpack.c.b16 %v1494, %v1493
      %v1504 = vpack.c.b16 %v1496, %v1495
      %1505 = vrot.lane.b32.xlu0 %v1497, 64
      %v1506 = vpop.permute.xlu0 %1505
      %1507 = vrot.lane.b32.xlu0 %v1498, 64
      %v1508 = vpop.permute.xlu0 %1507
      %1509 = vrot.lane.b32.xlu0 %v1499, 64
      %v1510 = vpop.permute.xlu0 %1509
      %1511 = vrot.lane.b32.xlu0 %v1500, 64
      %v1512 = vpop.permute.xlu0 %1511
      %1513 = vrot.lane.b32.xlu0 %v1501, 64
      %v1514 = vpop.permute.xlu0 %1513
      %1515 = vrot.lane.b32.xlu0 %v1502, 64
      %v1516 = vpop.permute.xlu0 %1515
      %1517 = vrot.lane.b32.xlu0 %v1503, 64
      %v1518 = vpop.permute.xlu0 %1517
      %1519 = vrot.lane.b32.xlu0 %v1504, 64
      %v1520 = vpop.permute.xlu0 %1519
      %vm1521 = vcmask 64512
      %v1524 = vsel %vm1521, %v1177, %v1210
      %v1527 = vsel %vm1521, %v1178, %v1212
      %v1530 = vsel %vm1521, %v1179, %v1214
      %v1533 = vsel %vm1521, %v1180, %v1216
      %v1536 = vsel %vm1521, %v1181, %v1218
      %v1539 = vsel %vm1521, %v1182, %v1220
      %v1542 = vsel %vm1521, %v1183, %v1222
      %v1545 = vsel %vm1521, %v1184, %v1224
      %vm1546 = vcmask 130048
      %v1548 = vsel %vm1546, %v1524, %v1250
      %v1550 = vsel %vm1546, %v1527, %v1252
      %v1552 = vsel %vm1546, %v1530, %v1254
      %v1554 = vsel %vm1546, %v1533, %v1256
      %v1556 = vsel %vm1546, %v1536, %v1258
      %v1558 = vsel %vm1546, %v1539, %v1260
      %v1560 = vsel %vm1546, %v1542, %v1262
      %v1562 = vsel %vm1546, %v1545, %v1264
      %vm1563 = vcmask 195584
      %v1565 = vsel %vm1563, %v1548, %v1298
      %v1567 = vsel %vm1563, %v1550, %v1300
      %v1569 = vsel %vm1563, %v1552, %v1302
      %v1571 = vsel %vm1563, %v1554, %v1304
      %v1573 = vsel %vm1563, %v1556, %v1306
      %v1575 = vsel %vm1563, %v1558, %v1308
      %v1577 = vsel %vm1563, %v1560, %v1310
      %v1579 = vsel %vm1563, %v1562, %v1312
      %vm1580 = vcmask 261120
      %v1582 = vsel %vm1580, %v1565, %v1338
      %v1584 = vsel %vm1580, %v1567, %v1340
      %v1586 = vsel %vm1580, %v1569, %v1342
      %v1588 = vsel %vm1580, %v1571, %v1344
      %v1590 = vsel %vm1580, %v1573, %v1346
      %v1592 = vsel %vm1580, %v1575, %v1348
      %v1594 = vsel %vm1580, %v1577, %v1350
      %v1596 = vsel %vm1580, %v1579, %v1352
      %vm1597 = vcmask 326656
      %v1599 = vsel %vm1597, %v1582, %v1378
      %v1601 = vsel %vm1597, %v1584, %v1380
      %v1603 = vsel %vm1597, %v1586, %v1382
      %v1605 = vsel %vm1597, %v1588, %v1384
      %v1607 = vsel %vm1597, %v1590, %v1386
      %v1609 = vsel %vm1597, %v1592, %v1388
      %v1611 = vsel %vm1597, %v1594, %v1390
      %v1613 = vsel %vm1597, %v1596, %v1392
      %vm1614 = vcmask 392192
      %v1616 = vsel %vm1614, %v1599, %v1426
      %v1618 = vsel %vm1614, %v1601, %v1428
      %v1620 = vsel %vm1614, %v1603, %v1430
      %v1622 = vsel %vm1614, %v1605, %v1432
      %v1624 = vsel %vm1614, %v1607, %v1434
      %v1626 = vsel %vm1614, %v1609, %v1436
      %v1628 = vsel %vm1614, %v1611, %v1438
      %v1630 = vsel %vm1614, %v1613, %v1440
      %vm1631 = vcmask 457728
      %v1633 = vsel %vm1631, %v1616, %v1466
      %v1635 = vsel %vm1631, %v1618, %v1468
      %v1637 = vsel %vm1631, %v1620, %v1470
      %v1639 = vsel %vm1631, %v1622, %v1472
      %v1641 = vsel %vm1631, %v1624, %v1474
      %v1643 = vsel %vm1631, %v1626, %v1476
      %v1645 = vsel %vm1631, %v1628, %v1478
      %v1647 = vsel %vm1631, %v1630, %v1480
      %vm1648 = vcmask 523264
      %v1650 = vsel %vm1648, %v1633, %v1506
      %v1652 = vsel %vm1648, %v1635, %v1508
      %v1654 = vsel %vm1648, %v1637, %v1510
      %v1656 = vsel %vm1648, %v1639, %v1512
      %v1658 = vsel %vm1648, %v1641, %v1514
      %v1660 = vsel %vm1648, %v1643, %v1516
      %v1662 = vsel %vm1648, %v1645, %v1518
      %v1664 = vsel %vm1648, %v1647, %v1520
      %v1666 = vlaneseq
      %v1667 = vshrl.u32 %v1666, 7
      %v1668 = vsub.s32 0, %v1667
      %v1669 = vrot.slane %v232, %v1668
      %v1680 = vunpack.c.l.b16 %v223
      %v1681 = vunpack.c.l.b16 %v224
      %v1682 = vunpack.c.l.b16 %v225
      %v1683 = vunpack.c.l.b16 %v226
      %v1684 = vunpack.c.l.b16 %v227
      %v1685 = vunpack.c.l.b16 %v228
      %v1686 = vunpack.c.l.b16 %v229
      %v1687 = vunpack.c.l.b16 %v230
      %v1688 = vunpack.c.l.b16 %v231
      %v1689 = vpack.c.b16 %v1681, %v1680
      %v1690 = vpack.c.b16 %v1683, %v1682
      %v1691 = vpack.c.b16 %v1685, %v1684
      %v1692 = vpack.c.b16 %v1687, %v1686
      %v1693 = vpack.c.b16 %v1688, %v1688
      %vm1698 = vcmask 588800
      %v1699 = vsel %vm1698, %v1650, 0
      %v1701 = vsel %vm1698, %v1652, 0
      %v1703 = vsel %vm1698, %v1654, 0
      %v1705 = vsel %vm1698, %v1656, 0
      %v1707 = vsel %vm1698, %v1658, 0
      %v1709 = vsel %vm1698, %v1660, 0
      %v1711 = vsel %vm1698, %v1662, 0
      %v1713 = vsel %vm1698, %v1664, 0
      %vm1715 = vcmask 1043456
      %v1717 = vsel %vm1715, %v1693, 0
      %1719 = vmatprep.subr.bf16.mxu0 0
      %1720 = vmatpush1.bf16.msra.mxu0 %v1689
      %1721 = vmatprep.subr.bf16.mxu0 0
      %1722 = vmatpush1.bf16.msra.mxu0 %v1690
      %1723 = vmatprep.subr.bf16.mxu0 0
      %1724 = vmatpush1.bf16.msra.mxu0 %v1691
      %1725 = vmatprep.subr.bf16.mxu0 0
      %1726 = vmatpush1.bf16.msra.mxu0 %v1692
      %1727 = vmatprep.subr.bf16.mxu0 0
      %1728 = vmatpush1.bf16.msra.mxu0 %v1717
      %1729 = vmatprep.subr.bf16.mxu0 0
      %1730 = vmatpush1.bf16.msra.mxu0 0
      %1731 = vmatprep.subr.bf16.mxu0 0
      %1732 = vmatpush1.bf16.msra.mxu0 0
      %1733 = vmatprep.subr.bf16.mxu0 0
      %1734 = vmatpush1.bf16.msra.mxu0 0
      %1735 = vmatprep.subr.bf16.mxu0 0
      %1736 = vmatpush1.bf16.msra.mxu0 0
      %1737 = vmatprep.subr.bf16.mxu0 0
      %1738 = vmatpush1.bf16.msra.mxu0 0
      %1739 = vmatprep.subr.bf16.mxu0 0
      %1740 = vmatpush1.bf16.msra.mxu0 0
      %1741 = vmatprep.subr.bf16.mxu0 0
      %1742 = vmatpush1.bf16.msra.mxu0 0
      %1743 = vmatprep.subr.bf16.mxu0 0
      %1744 = vmatpush1.bf16.msra.mxu0 0
      %1745 = vmatprep.subr.bf16.mxu0 0
      %1746 = vmatpush1.bf16.msra.mxu0 0
      %1747 = vmatprep.subr.bf16.mxu0 0
      %1748 = vmatpush1.bf16.msra.mxu0 0
      %1749 = vmatprep.subr.bf16.mxu0 0
      %1750 = vmatpush1.bf16.msra.mxu0 0
      %1751 = vmatprep.mubr.bf16.mxu0 0
      %1752 = vmatmul.mubr.bf16.gmra.mrb[0].mxu0 %v1699
      %v1753 = vpop.f32.mrb[0].mxu0
      %v1754 = vadd.f32 %v1669, %v1753
      %v1755 = vpop.f32.mrb[0].mxu0
      %v1756 = vpop.f32.mrb[0].mxu0
      %v1757 = vadd.f32 %v1669, %v1756
      %v1758 = vpop.f32.mrb[0].mxu0
      %1759 = vmatprep.mubr.bf16.mxu0 0
      %1760 = vmatmul.mubr.bf16.gmra.mrb[0].mxu0 %v1701
      %v1761 = vpop.f32.mrb[0].mxu0
      %v1762 = vadd.f32 %v1669, %v1761
      %v1763 = vpop.f32.mrb[0].mxu0
      %v1764 = vpop.f32.mrb[0].mxu0
      %v1765 = vadd.f32 %v1669, %v1764
      %v1766 = vpop.f32.mrb[0].mxu0
      %1767 = vmatprep.mubr.bf16.mxu0 0
      %1768 = vmatmul.mubr.bf16.gmra.mrb[0].mxu0 %v1703
      %v1769 = vpop.f32.mrb[0].mxu0
      %v1770 = vadd.f32 %v1669, %v1769
      %v1771 = vpop.f32.mrb[0].mxu0
      %v1772 = vpop.f32.mrb[0].mxu0
      %v1773 = vadd.f32 %v1669, %v1772
      %v1774 = vpop.f32.mrb[0].mxu0
      %1775 = vmatprep.mubr.bf16.mxu0 0
      %1776 = vmatmul.mubr.bf16.gmra.mrb[0].mxu0 %v1705
      %v1777 = vpop.f32.mrb[0].mxu0
      %v1778 = vadd.f32 %v1669, %v1777
      %v1779 = vpop.f32.mrb[0].mxu0
      %v1780 = vpop.f32.mrb[0].mxu0
      %v1781 = vadd.f32 %v1669, %v1780
      %v1782 = vpop.f32.mrb[0].mxu0
      %1783 = vmatprep.mubr.bf16.mxu0 0
      %1784 = vmatmul.mubr.bf16.gmra.mrb[0].mxu0 %v1707
      %v1785 = vpop.f32.mrb[0].mxu0
      %v1786 = vadd.f32 %v1669, %v1785
      %v1787 = vpop.f32.mrb[0].mxu0
      %v1788 = vpop.f32.mrb[0].mxu0
      %v1789 = vadd.f32 %v1669, %v1788
      %v1790 = vpop.f32.mrb[0].mxu0
      %1791 = vmatprep.mubr.bf16.mxu0 0
      %1792 = vmatmul.mubr.bf16.gmra.mrb[0].mxu0 %v1709
      %v1793 = vpop.f32.mrb[0].mxu0
      %v1794 = vadd.f32 %v1669, %v1793
      %v1795 = vpop.f32.mrb[0].mxu0
      %v1796 = vpop.f32.mrb[0].mxu0
      %v1797 = vadd.f32 %v1669, %v1796
      %v1798 = vpop.f32.mrb[0].mxu0
      %1799 = vmatprep.mubr.bf16.mxu0 0
      %1800 = vmatmul.mubr.bf16.gmra.mrb[0].mxu0 %v1711
      %v1801 = vpop.f32.mrb[0].mxu0
      %v1802 = vadd.f32 %v1669, %v1801
      %v1803 = vpop.f32.mrb[0].mxu0
      %v1804 = vpop.f32.mrb[0].mxu0
      %v1805 = vadd.f32 %v1669, %v1804
      %v1806 = vpop.f32.mrb[0].mxu0
      %1807 = vmatprep.mubr.bf16.mxu0 0
      %1808 = vmatmul.mubr.bf16.gmra.mrb[0].mxu0 %v1713
      %v1809 = vpop.f32.mrb[0].mxu0
      %v1810 = vadd.f32 %v1669, %v1809
      %v1811 = vpop.f32.mrb[0].mxu0
      %v1812 = vpop.f32.mrb[0].mxu0
      %v1813 = vadd.f32 %v1669, %v1812
      %v1814 = vpop.f32.mrb[0].mxu0
      %1815 = vdwg.mxu0
      %v1816 = vmax.f32 %v1754, 0.0
      %v1817 = vmax.f32 %v1757, 0.0
      %v1818 = vmax.f32 %v1762, 0.0
      %v1819 = vmax.f32 %v1765, 0.0
      %v1820 = vmax.f32 %v1770, 0.0
      %v1821 = vmax.f32 %v1773, 0.0
      %v1822 = vmax.f32 %v1778, 0.0
      %v1823 = vmax.f32 %v1781, 0.0
      %v1824 = vmax.f32 %v1786, 0.0
      %v1825 = vmax.f32 %v1789, 0.0
      %v1826 = vmax.f32 %v1794, 0.0
      %v1827 = vmax.f32 %v1797, 0.0
      %v1828 = vmax.f32 %v1802, 0.0
      %v1829 = vmax.f32 %v1805, 0.0
      %v1830 = vmax.f32 %v1810, 0.0
      %v1831 = vmax.f32 %v1813, 0.0
      %v1832 = vpack.c.bf16 %v1817, %v1816
      %v1833 = vpack.c.bf16 %v1819, %v1818
      %v1834 = vpack.c.bf16 %v1821, %v1820
      %v1835 = vpack.c.bf16 %v1823, %v1822
      %v1836 = vpack.c.bf16 %v1825, %v1824
      %v1837 = vpack.c.bf16 %v1827, %v1826
      %v1838 = vpack.c.bf16 %v1829, %v1828
      %v1839 = vpack.c.bf16 %v1831, %v1830
      %v1848 = vunpack.c.l.b16 %v1832
      %v1849 = vunpack.c.h.b16 %v1832
      %v1850 = vunpack.c.l.b16 %v1833
      %v1851 = vunpack.c.h.b16 %v1833
      %v1852 = vunpack.c.l.b16 %v1834
      %v1853 = vunpack.c.h.b16 %v1834
      %v1854 = vunpack.c.l.b16 %v1835
      %v1855 = vunpack.c.h.b16 %v1835
      %v1856 = vunpack.c.l.b16 %v1836
      %v1857 = vunpack.c.h.b16 %v1836
      %v1858 = vunpack.c.l.b16 %v1837
      %v1859 = vunpack.c.h.b16 %v1837
      %v1860 = vunpack.c.l.b16 %v1838
      %v1861 = vunpack.c.h.b16 %v1838
      %v1862 = vunpack.c.l.b16 %v1839
      %v1863 = vunpack.c.h.b16 %v1839
      %v1864 = vpack.c.b16 %v1848, %v1848
      %v1865 = vpack.c.b16 %v1849, %v1849
      %v1866 = vpack.c.b16 %v1850, %v1850
      %v1867 = vpack.c.b16 %v1851, %v1851
      %v1868 = vpack.c.b16 %v1852, %v1852
      %v1869 = vpack.c.b16 %v1853, %v1853
      %v1870 = vpack.c.b16 %v1854, %v1854
      %v1871 = vpack.c.b16 %v1855, %v1855
      %v1872 = vpack.c.b16 %v1856, %v1856
      %v1873 = vpack.c.b16 %v1857, %v1857
      %v1874 = vpack.c.b16 %v1858, %v1858
      %v1875 = vpack.c.b16 %v1859, %v1859
      %v1876 = vpack.c.b16 %v1860, %v1860
      %v1877 = vpack.c.b16 %v1861, %v1861
      %v1878 = vpack.c.b16 %v1862, %v1862
      %v1879 = vpack.c.b16 %v1863, %v1863
      %1896 = vst [vmem:[%s221] sm:$0xf] %v1864
      %1897 = vst [vmem:[%s221 + $0x4] sm:$0xf] %v1865
      %1898 = vst [vmem:[%s221 + $0x8] sm:$0xf] %v1866
      %1899 = vst [vmem:[%s221 + $0xc] sm:$0xf] %v1867
      %1900 = vst [vmem:[%s221 + $0x10] sm:$0xf] %v1868
      %1901 = vst [vmem:[%s221 + $0x14] sm:$0xf] %v1869
      %1902 = vst [vmem:[%s221 + $0x18] sm:$0xf] %v1870
      %1903 = vst [vmem:[%s221 + $0x1c] sm:$0xf] %v1871
      %1904 = vst [vmem:[%s221 + $0x20] sm:$0xf] %v1872
      %1905 = vst [vmem:[%s221 + $0x24] sm:$0xf] %v1873
      %1906 = vst [vmem:[%s221 + $0x28] sm:$0xf] %v1874
      %1907 = vst [vmem:[%s221 + $0x2c] sm:$0xf] %v1875
      %1908 = vst [vmem:[%s221 + $0x30] sm:$0xf] %v1876
      %1909 = vst [vmem:[%s221 + $0x34] sm:$0xf] %v1877
      %1910 = vst [vmem:[%s221 + $0x38] sm:$0xf] %v1878
      %1911 = vst [vmem:[%s221 + $0x3c] sm:$0xf] %v1879
      %s1912 = scalar_lea.vmem %s206, 96
      %v1913 = vld [vmem:[%s1912] sm:$0xf]
      %v1914 = vld [vmem:[%s1912 + $0x4] sm:$0xf]
      %v1915 = vld [vmem:[%s1912 + $0xc] sm:$0xf]
      %v1916 = vld [vmem:[%s1912 + $0x10] sm:$0xf]
      %v1917 = vld [vmem:[%s1912 + $0x18] sm:$0xf]
      %v1918 = vld [vmem:[%s1912 + $0x1c] sm:$0xf]
      %v1919 = vld [vmem:[%s1912 + $0x24] sm:$0xf]
      %v1920 = vld [vmem:[%s1912 + $0x28] sm:$0xf]
      %v1921 = vld [vmem:[%s1912 + $0x30] sm:$0xf]
      %v1922 = vld [vmem:[%s1912 + $0x34] sm:$0xf]
      %v1923 = vld [vmem:[%s1912 + $0x3c] sm:$0xf]
      %v1924 = vld [vmem:[%s1912 + $0x40] sm:$0xf]
      %v1925 = vld [vmem:[%s1912 + $0x48] sm:$0xf]
      %v1926 = vld [vmem:[%s1912 + $0x4c] sm:$0xf]
      %v1927 = vld [vmem:[%s1912 + $0x54] sm:$0xf]
      %v1928 = vld [vmem:[%s1912 + $0x58] sm:$0xf]
      %v1929 = vld [vmem:[%s1912 + $0x8] sm:$0x1]
      %v1930 = vld [vmem:[%s1912 + $0x14] sm:$0x1]
      %v1931 = vld [vmem:[%s1912 + $0x20] sm:$0x1]
      %v1932 = vld [vmem:[%s1912 + $0x2c] sm:$0x1]
      %v1933 = vld [vmem:[%s1912 + $0x38] sm:$0x1]
      %v1934 = vld [vmem:[%s1912 + $0x44] sm:$0x1]
      %v1935 = vld [vmem:[%s1912 + $0x50] sm:$0x1]
      %v1936 = vld [vmem:[%s1912 + $0x5c] sm:$0x1]
      %v1938 = vshrl.u32 %v1913, 16
      %v1940 = vrot.slane %v1938, 4
      %v1941 = vshll.u32 %v1913, 16
      %v1943 = vrot.slane %v1941, 5
      %v1944 = vor.u32 %v1940, %v1943
      %v1945 = vrot.slane %v1944, 4
      %v1947 = vshll.u32 %v1914, 16
      %v1949 = vrot.slane %v1947, 5
      %v1950 = vsel %vm259, %v1945, %v1949
      %v1951 = vshrl.u32 %v1914, 16
      %v1953 = vrot.slane %v1951, 4
      %v1954 = vor.u32 %v1953, %v1949
      %v1955 = vrot.slane %v1954, 4
      %v1957 = vshll.u32 %v1929, 16
      %v1959 = vrot.slane %v1957, 5
      %v1960 = vsel %vm259, %v1955, %v1959
      %v1962 = vshrl.u32 %v1915, 16
      %v1964 = vrot.slane %v1962, 4
      %v1965 = vshll.u32 %v1915, 16
      %v1967 = vrot.slane %v1965, 5
      %v1968 = vor.u32 %v1964, %v1967
      %v1969 = vrot.slane %v1968, 4
      %v1971 = vshll.u32 %v1916, 16
      %v1973 = vrot.slane %v1971, 5
      %v1974 = vsel %vm259, %v1969, %v1973
      %v1975 = vshrl.u32 %v1916, 16
      %v1977 = vrot.slane %v1975, 4
      %v1978 = vor.u32 %v1977, %v1973
      %v1979 = vrot.slane %v1978, 4
      %v1981 = vshll.u32 %v1930, 16
      %v1983 = vrot.slane %v1981, 5
      %v1984 = vsel %vm259, %v1979, %v1983
      %v1986 = vshrl.u32 %v1917, 16
      %v1988 = vrot.slane %v1986, 4
      %v1989 = vshll.u32 %v1917, 16
      %v1991 = vrot.slane %v1989, 5
      %v1992 = vor.u32 %v1988, %v1991
      %v1993 = vrot.slane %v1992, 4
      %v1995 = vshll.u32 %v1918, 16
      %v1997 = vrot.slane %v1995, 5
      %v1998 = vsel %vm259, %v1993, %v1997
      %v1999 = vshrl.u32 %v1918, 16
      %v2001 = vrot.slane %v1999, 4
      %v2002 = vor.u32 %v2001, %v1997
      %v2003 = vrot.slane %v2002, 4
      %v2005 = vshll.u32 %v1931, 16
      %v2007 = vrot.slane %v2005, 5
      %v2008 = vsel %vm259, %v2003, %v2007
      %v2010 = vshrl.u32 %v1919, 16
      %v2012 = vrot.slane %v2010, 4
      %v2013 = vshll.u32 %v1919, 16
      %v2015 = vrot.slane %v2013, 5
      %v2016 = vor.u32 %v2012, %v2015
      %v2017 = vrot.slane %v2016, 4
      %v2019 = vshll.u32 %v1920, 16
      %v2021 = vrot.slane %v2019, 5
      %v2022 = vsel %vm259, %v2017, %v2021
      %v2023 = vshrl.u32 %v1920, 16
      %v2025 = vrot.slane %v2023, 4
      %v2026 = vor.u32 %v2025, %v2021
      %v2027 = vrot.slane %v2026, 4
      %v2029 = vshll.u32 %v1932, 16
      %v2031 = vrot.slane %v2029, 5
      %v2032 = vsel %vm259, %v2027, %v2031
      %v2034 = vshrl.u32 %v1921, 16
      %v2036 = vrot.slane %v2034, 4
      %v2037 = vshll.u32 %v1921, 16
      %v2039 = vrot.slane %v2037, 5
      %v2040 = vor.u32 %v2036, %v2039
      %v2041 = vrot.slane %v2040, 4
      %v2043 = vshll.u32 %v1922, 16
      %v2045 = vrot.slane %v2043, 5
      %v2046 = vsel %vm259, %v2041, %v2045
      %v2047 = vshrl.u32 %v1922, 16
      %v2049 = vrot.slane %v2047, 4
      %v2050 = vor.u32 %v2049, %v2045
      %v2051 = vrot.slane %v2050, 4
      %v2053 = vshll.u32 %v1933, 16
      %v2055 = vrot.slane %v2053, 5
      %v2056 = vsel %vm259, %v2051, %v2055
      %v2058 = vshrl.u32 %v1923, 16
      %v2060 = vrot.slane %v2058, 4
      %v2061 = vshll.u32 %v1923, 16
      %v2063 = vrot.slane %v2061, 5
      %v2064 = vor.u32 %v2060, %v2063
      %v2065 = vrot.slane %v2064, 4
      %v2067 = vshll.u32 %v1924, 16
      %v2069 = vrot.slane %v2067, 5
      %v2070 = vsel %vm259, %v2065, %v2069
      %v2071 = vshrl.u32 %v1924, 16
      %v2073 = vrot.slane %v2071, 4
      %v2074 = vor.u32 %v2073, %v2069
      %v2075 = vrot.slane %v2074, 4
      %v2077 = vshll.u32 %v1934, 16
      %v2079 = vrot.slane %v2077, 5
      %v2080 = vsel %vm259, %v2075, %v2079
      %v2082 = vshrl.u32 %v1925, 16
      %v2084 = vrot.slane %v2082, 4
      %v2085 = vshll.u32 %v1925, 16
      %v2087 = vrot.slane %v2085, 5
      %v2088 = vor.u32 %v2084, %v2087
      %v2089 = vrot.slane %v2088, 4
      %v2091 = vshll.u32 %v1926, 16
      %v2093 = vrot.slane %v2091, 5
      %v2094 = vsel %vm259, %v2089, %v2093
      %v2095 = vshrl.u32 %v1926, 16
      %v2097 = vrot.slane %v2095, 4
      %v2098 = vor.u32 %v2097, %v2093
      %v2099 = vrot.slane %v2098, 4
      %v2101 = vshll.u32 %v1935, 16
      %v2103 = vrot.slane %v2101, 5
      %v2104 = vsel %vm259, %v2099, %v2103
      %v2106 = vshrl.u32 %v1927, 16
      %v2108 = vrot.slane %v2106, 4
      %v2109 = vshll.u32 %v1927, 16
      %v2111 = vrot.slane %v2109, 5
      %v2112 = vor.u32 %v2108, %v2111
      %v2113 = vrot.slane %v2112, 4
      %v2115 = vshll.u32 %v1928, 16
      %v2117 = vrot.slane %v2115, 5
      %v2118 = vsel %vm259, %v2113, %v2117
      %v2119 = vshrl.u32 %v1928, 16
      %v2121 = vrot.slane %v2119, 4
      %v2122 = vor.u32 %v2121, %v2117
      %v2123 = vrot.slane %v2122, 4
      %v2125 = vshll.u32 %v1936, 16
      %v2127 = vrot.slane %v2125, 5
      %v2128 = vsel %vm259, %v2123, %v2127
      %v2129 = vld [vmem:[%s1912] sm:$0xe]
      %v2130 = vld [vmem:[%s1912 + $0xc] sm:$0xe]
      %v2131 = vld [vmem:[%s1912 + $0x18] sm:$0xe]
      %v2132 = vld [vmem:[%s1912 + $0x24] sm:$0xe]
      %v2133 = vld [vmem:[%s1912 + $0x30] sm:$0xe]
      %v2134 = vld [vmem:[%s1912 + $0x3c] sm:$0xe]
      %v2135 = vld [vmem:[%s1912 + $0x48] sm:$0xe]
      %v2136 = vld [vmem:[%s1912 + $0x54] sm:$0xe]
      %v2161 = vrot.slane %v2129, 5
      %v2162 = vrot.slane %v2161, 4
      %v2163 = vrot.slane %v1914, 5
      %v2164 = vsel %vm486, %v2162, %v2163
      %v2165 = vrot.slane %v2163, 4
      %v2166 = vrot.slane %v1929, 5
      %v2167 = vsel %vm486, %v2165, %v2166
      %v2168 = vrot.slane %v2130, 5
      %v2169 = vrot.slane %v2168, 4
      %v2170 = vrot.slane %v1916, 5
      %v2171 = vsel %vm486, %v2169, %v2170
      %v2172 = vrot.slane %v2170, 4
      %v2173 = vrot.slane %v1930, 5
      %v2174 = vsel %vm486, %v2172, %v2173
      %v2175 = vrot.slane %v2131, 5
      %v2176 = vrot.slane %v2175, 4
      %v2177 = vrot.slane %v1918, 5
      %v2178 = vsel %vm486, %v2176, %v2177
      %v2179 = vrot.slane %v2177, 4
      %v2180 = vrot.slane %v1931, 5
      %v2181 = vsel %vm486, %v2179, %v2180
      %v2182 = vrot.slane %v2132, 5
      %v2183 = vrot.slane %v2182, 4
      %v2184 = vrot.slane %v1920, 5
      %v2185 = vsel %vm486, %v2183, %v2184
      %v2186 = vrot.slane %v2184, 4
      %v2187 = vrot.slane %v1932, 5
      %v2188 = vsel %vm486, %v2186, %v2187
      %v2189 = vrot.slane %v2133, 5
      %v2190 = vrot.slane %v2189, 4
      %v2191 = vrot.slane %v1922, 5
      %v2192 = vsel %vm486, %v2190, %v2191
      %v2193 = vrot.slane %v2191, 4
      %v2194 = vrot.slane %v1933, 5
      %v2195 = vsel %vm486, %v2193, %v2194
      %v2196 = vrot.slane %v2134, 5
      %v2197 = vrot.slane %v2196, 4
      %v2198 = vrot.slane %v1924, 5
      %v2199 = vsel %vm486, %v2197, %v2198
      %v2200 = vrot.slane %v2198, 4
      %v2201 = vrot.slane %v1934, 5
      %v2202 = vsel %vm486, %v2200, %v2201
      %v2203 = vrot.slane %v2135, 5
      %v2204 = vrot.slane %v2203, 4
      %v2205 = vrot.slane %v1926, 5
      %v2206 = vsel %vm486, %v2204, %v2205
      %v2207 = vrot.slane %v2205, 4
      %v2208 = vrot.slane %v1935, 5
      %v2209 = vsel %vm486, %v2207, %v2208
      %v2210 = vrot.slane %v2136, 5
      %v2211 = vrot.slane %v2210, 4
      %v2212 = vrot.slane %v1928, 5
      %v2213 = vsel %vm486, %v2211, %v2212
      %v2214 = vrot.slane %v2212, 4
      %v2215 = vrot.slane %v1936, 5
      %v2216 = vsel %vm486, %v2214, %v2215
      %s2217 = scalar_lea.vmem %s206, 108
      %v2218 = vld [vmem:[%s2217] sm:$0xf]
      %v2219 = vld [vmem:[%s2217 + $0x4] sm:$0xf]
      %v2220 = vld [vmem:[%s2217 + $0xc] sm:$0xf]
      %v2221 = vld [vmem:[%s2217 + $0x10] sm:$0xf]
      %v2222 = vld [vmem:[%s2217 + $0x18] sm:$0xf]
      %v2223 = vld [vmem:[%s2217 + $0x1c] sm:$0xf]
      %v2224 = vld [vmem:[%s2217 + $0x24] sm:$0xf]
      %v2225 = vld [vmem:[%s2217 + $0x28] sm:$0xf]
      %v2226 = vld [vmem:[%s2217 + $0x30] sm:$0xf]
      %v2227 = vld [vmem:[%s2217 + $0x34] sm:$0xf]
      %v2228 = vld [vmem:[%s2217 + $0x3c] sm:$0xf]
      %v2229 = vld [vmem:[%s2217 + $0x40] sm:$0xf]
      %v2230 = vld [vmem:[%s2217 + $0x48] sm:$0xf]
      %v2231 = vld [vmem:[%s2217 + $0x4c] sm:$0xf]
      %v2232 = vld [vmem:[%s2217 + $0x54] sm:$0xf]
      %v2233 = vld [vmem:[%s2217 + $0x58] sm:$0xf]
      %v2234 = vld [vmem:[%s2217 + $0x8] sm:$0x1]
      %v2235 = vld [vmem:[%s2217 + $0x14] sm:$0x1]
      %v2236 = vld [vmem:[%s2217 + $0x20] sm:$0x1]
      %v2237 = vld [vmem:[%s2217 + $0x2c] sm:$0x1]
      %v2238 = vld [vmem:[%s2217 + $0x38] sm:$0x1]
      %v2239 = vld [vmem:[%s2217 + $0x44] sm:$0x1]
      %v2240 = vld [vmem:[%s2217 + $0x50] sm:$0x1]
      %v2241 = vld [vmem:[%s2217 + $0x5c] sm:$0x1]
      %v2243 = vshrl.u32 %v2218, 16
      %v2245 = vrot.slane %v2243, 4
      %v2246 = vshll.u32 %v2218, 16
      %v2248 = vrot.slane %v2246, 5
      %v2249 = vor.u32 %v2245, %v2248
      %v2250 = vrot.slane %v2249, 4
      %v2252 = vshll.u32 %v2219, 16
      %v2254 = vrot.slane %v2252, 5
      %v2255 = vsel %vm259, %v2250, %v2254
      %v2256 = vshrl.u32 %v2219, 16
      %v2258 = vrot.slane %v2256, 4
      %v2259 = vor.u32 %v2258, %v2254
      %v2260 = vrot.slane %v2259, 4
      %v2262 = vshll.u32 %v2234, 16
      %v2264 = vrot.slane %v2262, 5
      %v2265 = vsel %vm259, %v2260, %v2264
      %v2267 = vshrl.u32 %v2220, 16
      %v2269 = vrot.slane %v2267, 4
      %v2270 = vshll.u32 %v2220, 16
      %v2272 = vrot.slane %v2270, 5
      %v2273 = vor.u32 %v2269, %v2272
      %v2274 = vrot.slane %v2273, 4
      %v2276 = vshll.u32 %v2221, 16
      %v2278 = vrot.slane %v2276, 5
      %v2279 = vsel %vm259, %v2274, %v2278
      %v2280 = vshrl.u32 %v2221, 16
      %v2282 = vrot.slane %v2280, 4
      %v2283 = vor.u32 %v2282, %v2278
      %v2284 = vrot.slane %v2283, 4
      %v2286 = vshll.u32 %v2235, 16
      %v2288 = vrot.slane %v2286, 5
      %v2289 = vsel %vm259, %v2284, %v2288
      %v2291 = vshrl.u32 %v2222, 16
      %v2293 = vrot.slane %v2291, 4
      %v2294 = vshll.u32 %v2222, 16
      %v2296 = vrot.slane %v2294, 5
      %v2297 = vor.u32 %v2293, %v2296
      %v2298 = vrot.slane %v2297, 4
      %v2300 = vshll.u32 %v2223, 16
      %v2302 = vrot.slane %v2300, 5
      %v2303 = vsel %vm259, %v2298, %v2302
      %v2304 = vshrl.u32 %v2223, 16
      %v2306 = vrot.slane %v2304, 4
      %v2307 = vor.u32 %v2306, %v2302
      %v2308 = vrot.slane %v2307, 4
      %v2310 = vshll.u32 %v2236, 16
      %v2312 = vrot.slane %v2310, 5
      %v2313 = vsel %vm259, %v2308, %v2312
      %v2315 = vshrl.u32 %v2224, 16
      %v2317 = vrot.slane %v2315, 4
      %v2318 = vshll.u32 %v2224, 16
      %v2320 = vrot.slane %v2318, 5
      %v2321 = vor.u32 %v2317, %v2320
      %v2322 = vrot.slane %v2321, 4
      %v2324 = vshll.u32 %v2225, 16
      %v2326 = vrot.slane %v2324, 5
      %v2327 = vsel %vm259, %v2322, %v2326
      %v2328 = vshrl.u32 %v2225, 16
      %v2330 = vrot.slane %v2328, 4
      %v2331 = vor.u32 %v2330, %v2326
      %v2332 = vrot.slane %v2331, 4
      %v2334 = vshll.u32 %v2237, 16
      %v2336 = vrot.slane %v2334, 5
      %v2337 = vsel %vm259, %v2332, %v2336
      %v2339 = vshrl.u32 %v2226, 16
      %v2341 = vrot.slane %v2339, 4
      %v2342 = vshll.u32 %v2226, 16
      %v2344 = vrot.slane %v2342, 5
      %v2345 = vor.u32 %v2341, %v2344
      %v2346 = vrot.slane %v2345, 4
      %v2348 = vshll.u32 %v2227, 16
      %v2350 = vrot.slane %v2348, 5
      %v2351 = vsel %vm259, %v2346, %v2350
      %v2352 = vshrl.u32 %v2227, 16
      %v2354 = vrot.slane %v2352, 4
      %v2355 = vor.u32 %v2354, %v2350
      %v2356 = vrot.slane %v2355, 4
      %v2358 = vshll.u32 %v2238, 16
      %v2360 = vrot.slane %v2358, 5
      %v2361 = vsel %vm259, %v2356, %v2360
      %v2363 = vshrl.u32 %v2228, 16
      %v2365 = vrot.slane %v2363, 4
      %v2366 = vshll.u32 %v2228, 16
      %v2368 = vrot.slane %v2366, 5
      %v2369 = vor.u32 %v2365, %v2368
      %v2370 = vrot.slane %v2369, 4
      %v2372 = vshll.u32 %v2229, 16
      %v2374 = vrot.slane %v2372, 5
      %v2375 = vsel %vm259, %v2370, %v2374
      %v2376 = vshrl.u32 %v2229, 16
      %v2378 = vrot.slane %v2376, 4
      %v2379 = vor.u32 %v2378, %v2374
      %v2380 = vrot.slane %v2379, 4
      %v2382 = vshll.u32 %v2239, 16
      %v2384 = vrot.slane %v2382, 5
      %v2385 = vsel %vm259, %v2380, %v2384
      %v2387 = vshrl.u32 %v2230, 16
      %v2389 = vrot.slane %v2387, 4
      %v2390 = vshll.u32 %v2230, 16
      %v2392 = vrot.slane %v2390, 5
      %v2393 = vor.u32 %v2389, %v2392
      %v2394 = vrot.slane %v2393, 4
      %v2396 = vshll.u32 %v2231, 16
      %v2398 = vrot.slane %v2396, 5
      %v2399 = vsel %vm259, %v2394, %v2398
      %v2400 = vshrl.u32 %v2231, 16
      %v2402 = vrot.slane %v2400, 4
      %v2403 = vor.u32 %v2402, %v2398
      %v2404 = vrot.slane %v2403, 4
      %v2406 = vshll.u32 %v2240, 16
      %v2408 = vrot.slane %v2406, 5
      %v2409 = vsel %vm259, %v2404, %v2408
      %v2411 = vshrl.u32 %v2232, 16
      %v2413 = vrot.slane %v2411, 4
      %v2414 = vshll.u32 %v2232, 16
      %v2416 = vrot.slane %v2414, 5
      %v2417 = vor.u32 %v2413, %v2416
      %v2418 = vrot.slane %v2417, 4
      %v2420 = vshll.u32 %v2233, 16
      %v2422 = vrot.slane %v2420, 5
      %v2423 = vsel %vm259, %v2418, %v2422
      %v2424 = vshrl.u32 %v2233, 16
      %v2426 = vrot.slane %v2424, 4
      %v2427 = vor.u32 %v2426, %v2422
      %v2428 = vrot.slane %v2427, 4
      %v2430 = vshll.u32 %v2241, 16
      %v2432 = vrot.slane %v2430, 5
      %v2433 = vsel %vm259, %v2428, %v2432
      %v2434 = vld [vmem:[%s2217] sm:$0xe]
      %v2435 = vld [vmem:[%s2217 + $0xc] sm:$0xe]
      %v2436 = vld [vmem:[%s2217 + $0x18] sm:$0xe]
      %v2437 = vld [vmem:[%s2217 + $0x24] sm:$0xe]
      %v2438 = vld [vmem:[%s2217 + $0x30] sm:$0xe]
      %v2439 = vld [vmem:[%s2217 + $0x3c] sm:$0xe]
      %v2440 = vld [vmem:[%s2217 + $0x48] sm:$0xe]
      %v2441 = vld [vmem:[%s2217 + $0x54] sm:$0xe]
      %v2466 = vrot.slane %v2434, 5
      %v2467 = vrot.slane %v2466, 4
      %v2468 = vrot.slane %v2219, 5
      %v2469 = vsel %vm486, %v2467, %v2468
      %v2470 = vrot.slane %v2468, 4
      %v2471 = vrot.slane %v2234, 5
      %v2472 = vsel %vm486, %v2470, %v2471
      %v2473 = vrot.slane %v2435, 5
      %v2474 = vrot.slane %v2473, 4
      %v2475 = vrot.slane %v2221, 5
      %v2476 = vsel %vm486, %v2474, %v2475
      %v2477 = vrot.slane %v2475, 4
      %v2478 = vrot.slane %v2235, 5
      %v2479 = vsel %vm486, %v2477, %v2478
      %v2480 = vrot.slane %v2436, 5
      %v2481 = vrot.slane %v2480, 4
      %v2482 = vrot.slane %v2223, 5
      %v2483 = vsel %vm486, %v2481, %v2482
      %v2484 = vrot.slane %v2482, 4
      %v2485 = vrot.slane %v2236, 5
      %v2486 = vsel %vm486, %v2484, %v2485
      %v2487 = vrot.slane %v2437, 5
      %v2488 = vrot.slane %v2487, 4
      %v2489 = vrot.slane %v2225, 5
      %v2490 = vsel %vm486, %v2488, %v2489
      %v2491 = vrot.slane %v2489, 4
      %v2492 = vrot.slane %v2237, 5
      %v2493 = vsel %vm486, %v2491, %v2492
      %v2494 = vrot.slane %v2438, 5
      %v2495 = vrot.slane %v2494, 4
      %v2496 = vrot.slane %v2227, 5
      %v2497 = vsel %vm486, %v2495, %v2496
      %v2498 = vrot.slane %v2496, 4
      %v2499 = vrot.slane %v2238, 5
      %v2500 = vsel %vm486, %v2498, %v2499
      %v2501 = vrot.slane %v2439, 5
      %v2502 = vrot.slane %v2501, 4
      %v2503 = vrot.slane %v2229, 5
      %v2504 = vsel %vm486, %v2502, %v2503
      %v2505 = vrot.slane %v2503, 4
      %v2506 = vrot.slane %v2239, 5
      %v2507 = vsel %vm486, %v2505, %v2506
      %v2508 = vrot.slane %v2440, 5
      %v2509 = vrot.slane %v2508, 4
      %v2510 = vrot.slane %v2231, 5
      %v2511 = vsel %vm486, %v2509, %v2510
      %v2512 = vrot.slane %v2510, 4
      %v2513 = vrot.slane %v2240, 5
      %v2514 = vsel %vm486, %v2512, %v2513
      %v2515 = vrot.slane %v2441, 5
      %v2516 = vrot.slane %v2515, 4
      %v2517 = vrot.slane %v2233, 5
      %v2518 = vsel %vm486, %v2516, %v2517
      %v2519 = vrot.slane %v2517, 4
      %v2520 = vrot.slane %v2241, 5
      %v2521 = vsel %vm486, %v2519, %v2520
      %s2522 = scalar_lea.vmem %s206, 120
      %v2523 = vld [vmem:[%s2522] sm:$0xf]
      %v2524 = vld [vmem:[%s2522 + $0x4] sm:$0xf]
      %v2525 = vld [vmem:[%s2522 + $0xc] sm:$0xf]
      %v2526 = vld [vmem:[%s2522 + $0x10] sm:$0xf]
      %v2527 = vld [vmem:[%s2522 + $0x18] sm:$0xf]
      %v2528 = vld [vmem:[%s2522 + $0x1c] sm:$0xf]
      %v2529 = vld [vmem:[%s2522 + $0x24] sm:$0xf]
      %v2530 = vld [vmem:[%s2522 + $0x28] sm:$0xf]
      %v2531 = vld [vmem:[%s2522 + $0x30] sm:$0xf]
      %v2532 = vld [vmem:[%s2522 + $0x34] sm:$0xf]
      %v2533 = vld [vmem:[%s2522 + $0x3c] sm:$0xf]
      %v2534 = vld [vmem:[%s2522 + $0x40] sm:$0xf]
      %v2535 = vld [vmem:[%s2522 + $0x48] sm:$0xf]
      %v2536 = vld [vmem:[%s2522 + $0x4c] sm:$0xf]
      %v2537 = vld [vmem:[%s2522 + $0x54] sm:$0xf]
      %v2538 = vld [vmem:[%s2522 + $0x58] sm:$0xf]
      %v2539 = vld [vmem:[%s2522 + $0x8] sm:$0x1]
      %v2540 = vld [vmem:[%s2522 + $0x14] sm:$0x1]
      %v2541 = vld [vmem:[%s2522 + $0x20] sm:$0x1]
      %v2542 = vld [vmem:[%s2522 + $0x2c] sm:$0x1]
      %v2543 = vld [vmem:[%s2522 + $0x38] sm:$0x1]
      %v2544 = vld [vmem:[%s2522 + $0x44] sm:$0x1]
      %v2545 = vld [vmem:[%s2522 + $0x50] sm:$0x1]
      %v2546 = vld [vmem:[%s2522 + $0x5c] sm:$0x1]
      %v2548 = vshrl.u32 %v2523, 16
      %v2550 = vrot.slane %v2548, 4
      %v2551 = vshll.u32 %v2523, 16
      %v2553 = vrot.slane %v2551, 5
      %v2554 = vor.u32 %v2550, %v2553
      %v2555 = vrot.slane %v2554, 4
      %v2557 = vshll.u32 %v2524, 16
      %v2559 = vrot.slane %v2557, 5
      %v2560 = vsel %vm259, %v2555, %v2559
      %v2561 = vshrl.u32 %v2524, 16
      %v2563 = vrot.slane %v2561, 4
      %v2564 = vor.u32 %v2563, %v2559
      %v2565 = vrot.slane %v2564, 4
      %v2567 = vshll.u32 %v2539, 16
      %v2569 = vrot.slane %v2567, 5
      %v2570 = vsel %vm259, %v2565, %v2569
      %v2572 = vshrl.u32 %v2525, 16
      %v2574 = vrot.slane %v2572, 4
      %v2575 = vshll.u32 %v2525, 16
      %v2577 = vrot.slane %v2575, 5
      %v2578 = vor.u32 %v2574, %v2577
      %v2579 = vrot.slane %v2578, 4
      %v2581 = vshll.u32 %v2526, 16
      %v2583 = vrot.slane %v2581, 5
      %v2584 = vsel %vm259, %v2579, %v2583
      %v2585 = vshrl.u32 %v2526, 16
      %v2587 = vrot.slane %v2585, 4
      %v2588 = vor.u32 %v2587, %v2583
      %v2589 = vrot.slane %v2588, 4
      %v2591 = vshll.u32 %v2540, 16
      %v2593 = vrot.slane %v2591, 5
      %v2594 = vsel %vm259, %v2589, %v2593
      %v2596 = vshrl.u32 %v2527, 16
      %v2598 = vrot.slane %v2596, 4
      %v2599 = vshll.u32 %v2527, 16
      %v2601 = vrot.slane %v2599, 5
      %v2602 = vor.u32 %v2598, %v2601
      %v2603 = vrot.slane %v2602, 4
      %v2605 = vshll.u32 %v2528, 16
      %v2607 = vrot.slane %v2605, 5
      %v2608 = vsel %vm259, %v2603, %v2607
      %v2609 = vshrl.u32 %v2528, 16
      %v2611 = vrot.slane %v2609, 4
      %v2612 = vor.u32 %v2611, %v2607
      %v2613 = vrot.slane %v2612, 4
      %v2615 = vshll.u32 %v2541, 16
      %v2617 = vrot.slane %v2615, 5
      %v2618 = vsel %vm259, %v2613, %v2617
      %v2620 = vshrl.u32 %v2529, 16
      %v2622 = vrot.slane %v2620, 4
      %v2623 = vshll.u32 %v2529, 16
      %v2625 = vrot.slane %v2623, 5
      %v2626 = vor.u32 %v2622, %v2625
      %v2627 = vrot.slane %v2626, 4
      %v2629 = vshll.u32 %v2530, 16
      %v2631 = vrot.slane %v2629, 5
      %v2632 = vsel %vm259, %v2627, %v2631
      %v2633 = vshrl.u32 %v2530, 16
      %v2635 = vrot.slane %v2633, 4
      %v2636 = vor.u32 %v2635, %v2631
      %v2637 = vrot.slane %v2636, 4
      %v2639 = vshll.u32 %v2542, 16
      %v2641 = vrot.slane %v2639, 5
      %v2642 = vsel %vm259, %v2637, %v2641
      %v2644 = vshrl.u32 %v2531, 16
      %v2646 = vrot.slane %v2644, 4
      %v2647 = vshll.u32 %v2531, 16
      %v2649 = vrot.slane %v2647, 5
      %v2650 = vor.u32 %v2646, %v2649
      %v2651 = vrot.slane %v2650, 4
      %v2653 = vshll.u32 %v2532, 16
      %v2655 = vrot.slane %v2653, 5
      %v2656 = vsel %vm259, %v2651, %v2655
      %v2657 = vshrl.u32 %v2532, 16
      %v2659 = vrot.slane %v2657, 4
      %v2660 = vor.u32 %v2659, %v2655
      %v2661 = vrot.slane %v2660, 4
      %v2663 = vshll.u32 %v2543, 16
      %v2665 = vrot.slane %v2663, 5
      %v2666 = vsel %vm259, %v2661, %v2665
      %v2668 = vshrl.u32 %v2533, 16
      %v2670 = vrot.slane %v2668, 4
      %v2671 = vshll.u32 %v2533, 16
      %v2673 = vrot.slane %v2671, 5
      %v2674 = vor.u32 %v2670, %v2673
      %v2675 = vrot.slane %v2674, 4
      %v2677 = vshll.u32 %v2534, 16
      %v2679 = vrot.slane %v2677, 5
      %v2680 = vsel %vm259, %v2675, %v2679
      %v2681 = vshrl.u32 %v2534, 16
      %v2683 = vrot.slane %v2681, 4
      %v2684 = vor.u32 %v2683, %v2679
      %v2685 = vrot.slane %v2684, 4
      %v2687 = vshll.u32 %v2544, 16
      %v2689 = vrot.slane %v2687, 5
      %v2690 = vsel %vm259, %v2685, %v2689
      %v2692 = vshrl.u32 %v2535, 16
      %v2694 = vrot.slane %v2692, 4
      %v2695 = vshll.u32 %v2535, 16
      %v2697 = vrot.slane %v2695, 5
      %v2698 = vor.u32 %v2694, %v2697
      %v2699 = vrot.slane %v2698, 4
      %v2701 = vshll.u32 %v2536, 16
      %v2703 = vrot.slane %v2701, 5
      %v2704 = vsel %vm259, %v2699, %v2703
      %v2705 = vshrl.u32 %v2536, 16
      %v2707 = vrot.slane %v2705, 4
      %v2708 = vor.u32 %v2707, %v2703
      %v2709 = vrot.slane %v2708, 4
      %v2711 = vshll.u32 %v2545, 16
      %v2713 = vrot.slane %v2711, 5
      %v2714 = vsel %vm259, %v2709, %v2713
      %v2716 = vshrl.u32 %v2537, 16
      %v2718 = vrot.slane %v2716, 4
      %v2719 = vshll.u32 %v2537, 16
      %v2721 = vrot.slane %v2719, 5
      %v2722 = vor.u32 %v2718, %v2721
      %v2723 = vrot.slane %v2722, 4
      %v2725 = vshll.u32 %v2538, 16
      %v2727 = vrot.slane %v2725, 5
      %v2728 = vsel %vm259, %v2723, %v2727
      %v2729 = vshrl.u32 %v2538, 16
      %v2731 = vrot.slane %v2729, 4
      %v2732 = vor.u32 %v2731, %v2727
      %v2733 = vrot.slane %v2732, 4
      %v2735 = vshll.u32 %v2546, 16
      %v2737 = vrot.slane %v2735, 5
      %v2738 = vsel %vm259, %v2733, %v2737
      %v2739 = vld [vmem:[%s2522] sm:$0xe]
      %v2740 = vld [vmem:[%s2522 + $0xc] sm:$0xe]
      %v2741 = vld [vmem:[%s2522 + $0x18] sm:$0xe]
      %v2742 = vld [vmem:[%s2522 + $0x24] sm:$0xe]
      %v2743 = vld [vmem:[%s2522 + $0x30] sm:$0xe]
      %v2744 = vld [vmem:[%s2522 + $0x3c] sm:$0xe]
      %v2745 = vld [vmem:[%s2522 + $0x48] sm:$0xe]
      %v2746 = vld [vmem:[%s2522 + $0x54] sm:$0xe]
      %v2771 = vrot.slane %v2739, 5
      %v2772 = vrot.slane %v2771, 4
      %v2773 = vrot.slane %v2524, 5
      %v2774 = vsel %vm486, %v2772, %v2773
      %v2775 = vrot.slane %v2773, 4
      %v2776 = vrot.slane %v2539, 5
      %v2777 = vsel %vm486, %v2775, %v2776
      %v2778 = vrot.slane %v2740, 5
      %v2779 = vrot.slane %v2778, 4
      %v2780 = vrot.slane %v2526, 5
      %v2781 = vsel %vm486, %v2779, %v2780
      %v2782 = vrot.slane %v2780, 4
      %v2783 = vrot.slane %v2540, 5
      %v2784 = vsel %vm486, %v2782, %v2783
      %v2785 = vrot.slane %v2741, 5
      %v2786 = vrot.slane %v2785, 4
      %v2787 = vrot.slane %v2528, 5
      %v2788 = vsel %vm486, %v2786, %v2787
      %v2789 = vrot.slane %v2787, 4
      %v2790 = vrot.slane %v2541, 5
      %v2791 = vsel %vm486, %v2789, %v2790
      %v2792 = vrot.slane %v2742, 5
      %v2793 = vrot.slane %v2792, 4
      %v2794 = vrot.slane %v2530, 5
      %v2795 = vsel %vm486, %v2793, %v2794
      %v2796 = vrot.slane %v2794, 4
      %v2797 = vrot.slane %v2542, 5
      %v2798 = vsel %vm486, %v2796, %v2797
      %v2799 = vrot.slane %v2743, 5
      %v2800 = vrot.slane %v2799, 4
      %v2801 = vrot.slane %v2532, 5
      %v2802 = vsel %vm486, %v2800, %v2801
      %v2803 = vrot.slane %v2801, 4
      %v2804 = vrot.slane %v2543, 5
      %v2805 = vsel %vm486, %v2803, %v2804
      %v2806 = vrot.slane %v2744, 5
      %v2807 = vrot.slane %v2806, 4
      %v2808 = vrot.slane %v2534, 5
      %v2809 = vsel %vm486, %v2807, %v2808
      %v2810 = vrot.slane %v2808, 4
      %v2811 = vrot.slane %v2544, 5
      %v2812 = vsel %vm486, %v2810, %v2811
      %v2813 = vrot.slane %v2745, 5
      %v2814 = vrot.slane %v2813, 4
      %v2815 = vrot.slane %v2536, 5
      %v2816 = vsel %vm486, %v2814, %v2815
      %v2817 = vrot.slane %v2815, 4
      %v2818 = vrot.slane %v2545, 5
      %v2819 = vsel %vm486, %v2817, %v2818
      %v2820 = vrot.slane %v2746, 5
      %v2821 = vrot.slane %v2820, 4
      %v2822 = vrot.slane %v2538, 5
      %v2823 = vsel %vm486, %v2821, %v2822
      %v2824 = vrot.slane %v2822, 4
      %v2825 = vrot.slane %v2546, 5
      %v2826 = vsel %vm486, %v2824, %v2825
      %v2835 = vunpack.c.l.b16 %v1913
      %v2836 = vunpack.c.l.b16 %v1914
      %v2837 = vunpack.c.l.b16 %v1915
      %v2838 = vunpack.c.l.b16 %v1916
      %v2839 = vunpack.c.l.b16 %v1917
      %v2840 = vunpack.c.l.b16 %v1918
      %v2841 = vunpack.c.l.b16 %v1919
      %v2842 = vunpack.c.l.b16 %v1920
      %v2843 = vunpack.c.l.b16 %v1921
      %v2844 = vunpack.c.l.b16 %v1922
      %v2845 = vunpack.c.l.b16 %v1923
      %v2846 = vunpack.c.l.b16 %v1924
      %v2847 = vunpack.c.l.b16 %v1925
      %v2848 = vunpack.c.l.b16 %v1926
      %v2849 = vunpack.c.l.b16 %v1927
      %v2850 = vunpack.c.l.b16 %v1928
      %v2851 = vpack.c.b16 %v2836, %v2835
      %v2852 = vpack.c.b16 %v2838, %v2837
      %v2853 = vpack.c.b16 %v2840, %v2839
      %v2854 = vpack.c.b16 %v2842, %v2841
      %v2855 = vpack.c.b16 %v2844, %v2843
      %v2856 = vpack.c.b16 %v2846, %v2845
      %v2857 = vpack.c.b16 %v2848, %v2847
      %v2858 = vpack.c.b16 %v2850, %v2849
      %v2859 = vunpack.c.l.b16 %v1950
      %v2860 = vunpack.c.l.b16 %v1960
      %v2861 = vunpack.c.l.b16 %v1974
      %v2862 = vunpack.c.l.b16 %v1984
      %v2863 = vunpack.c.l.b16 %v1998
      %v2864 = vunpack.c.l.b16 %v2008
      %v2865 = vunpack.c.l.b16 %v2022
      %v2866 = vunpack.c.l.b16 %v2032
      %v2867 = vunpack.c.l.b16 %v2046
      %v2868 = vunpack.c.l.b16 %v2056
      %v2869 = vunpack.c.l.b16 %v2070
      %v2870 = vunpack.c.l.b16 %v2080
      %v2871 = vunpack.c.l.b16 %v2094
      %v2872 = vunpack.c.l.b16 %v2104
      %v2873 = vunpack.c.l.b16 %v2118
      %v2874 = vunpack.c.l.b16 %v2128
      %v2875 = vpack.c.b16 %v2860, %v2859
      %v2876 = vpack.c.b16 %v2862, %v2861
      %v2877 = vpack.c.b16 %v2864, %v2863
      %v2878 = vpack.c.b16 %v2866, %v2865
      %v2879 = vpack.c.b16 %v2868, %v2867
      %v2880 = vpack.c.b16 %v2870, %v2869
      %v2881 = vpack.c.b16 %v2872, %v2871
      %v2882 = vpack.c.b16 %v2874, %v2873
      %2883 = vrot.lane.b32.xlu0 %v2875, 8
      %v2884 = vpop.permute.xlu0 %2883
      %2885 = vrot.lane.b32.xlu0 %v2876, 8
      %v2886 = vpop.permute.xlu0 %2885
      %2887 = vrot.lane.b32.xlu0 %v2877, 8
      %v2888 = vpop.permute.xlu0 %2887
      %2889 = vrot.lane.b32.xlu0 %v2878, 8
      %v2890 = vpop.permute.xlu0 %2889
      %2891 = vrot.lane.b32.xlu0 %v2879, 8
      %v2892 = vpop.permute.xlu0 %2891
      %2893 = vrot.lane.b32.xlu0 %v2880, 8
      %v2894 = vpop.permute.xlu0 %2893
      %2895 = vrot.lane.b32.xlu0 %v2881, 8
      %v2896 = vpop.permute.xlu0 %2895
      %2897 = vrot.lane.b32.xlu0 %v2882, 8
      %v2898 = vpop.permute.xlu0 %2897
      %v2899 = vunpack.c.l.b16 %v2164
      %v2900 = vunpack.c.l.b16 %v2167
      %v2901 = vunpack.c.l.b16 %v2171
      %v2902 = vunpack.c.l.b16 %v2174
      %v2903 = vunpack.c.l.b16 %v2178
      %v2904 = vunpack.c.l.b16 %v2181
      %v2905 = vunpack.c.l.b16 %v2185
      %v2906 = vunpack.c.l.b16 %v2188
      %v2907 = vunpack.c.l.b16 %v2192
      %v2908 = vunpack.c.l.b16 %v2195
      %v2909 = vunpack.c.l.b16 %v2199
      %v2910 = vunpack.c.l.b16 %v2202
      %v2911 = vunpack.c.l.b16 %v2206
      %v2912 = vunpack.c.l.b16 %v2209
      %v2913 = vunpack.c.l.b16 %v2213
      %v2914 = vunpack.c.l.b16 %v2216
      %v2915 = vpack.c.b16 %v2900, %v2899
      %v2916 = vpack.c.b16 %v2902, %v2901
      %v2917 = vpack.c.b16 %v2904, %v2903
      %v2918 = vpack.c.b16 %v2906, %v2905
      %v2919 = vpack.c.b16 %v2908, %v2907
      %v2920 = vpack.c.b16 %v2910, %v2909
      %v2921 = vpack.c.b16 %v2912, %v2911
      %v2922 = vpack.c.b16 %v2914, %v2913
      %2923 = vrot.lane.b32.xlu0 %v2915, 16
      %v2924 = vpop.permute.xlu0 %2923
      %2925 = vrot.lane.b32.xlu0 %v2916, 16
      %v2926 = vpop.permute.xlu0 %2925
      %2927 = vrot.lane.b32.xlu0 %v2917, 16
      %v2928 = vpop.permute.xlu0 %2927
      %2929 = vrot.lane.b32.xlu0 %v2918, 16
      %v2930 = vpop.permute.xlu0 %2929
      %2931 = vrot.lane.b32.xlu0 %v2919, 16
      %v2932 = vpop.permute.xlu0 %2931
      %2933 = vrot.lane.b32.xlu0 %v2920, 16
      %v2934 = vpop.permute.xlu0 %2933
      %2935 = vrot.lane.b32.xlu0 %v2921, 16
      %v2936 = vpop.permute.xlu0 %2935
      %2937 = vrot.lane.b32.xlu0 %v2922, 16
      %v2938 = vpop.permute.xlu0 %2937
      %v2947 = vunpack.c.l.b16 %v2218
      %v2948 = vunpack.c.l.b16 %v2219
      %v2949 = vunpack.c.l.b16 %v2220
      %v2950 = vunpack.c.l.b16 %v2221
      %v2951 = vunpack.c.l.b16 %v2222
      %v2952 = vunpack.c.l.b16 %v2223
      %v2953 = vunpack.c.l.b16 %v2224
      %v2954 = vunpack.c.l.b16 %v2225
      %v2955 = vunpack.c.l.b16 %v2226
      %v2956 = vunpack.c.l.b16 %v2227
      %v2957 = vunpack.c.l.b16 %v2228
      %v2958 = vunpack.c.l.b16 %v2229
      %v2959 = vunpack.c.l.b16 %v2230
      %v2960 = vunpack.c.l.b16 %v2231
      %v2961 = vunpack.c.l.b16 %v2232
      %v2962 = vunpack.c.l.b16 %v2233
      %v2963 = vpack.c.b16 %v2948, %v2947
      %v2964 = vpack.c.b16 %v2950, %v2949
      %v2965 = vpack.c.b16 %v2952, %v2951
      %v2966 = vpack.c.b16 %v2954, %v2953
      %v2967 = vpack.c.b16 %v2956, %v2955
      %v2968 = vpack.c.b16 %v2958, %v2957
      %v2969 = vpack.c.b16 %v2960, %v2959
      %v2970 = vpack.c.b16 %v2962, %v2961
      %2971 = vrot.lane.b32.xlu0 %v2963, 24
      %v2972 = vpop.permute.xlu0 %2971
      %2973 = vrot.lane.b32.xlu0 %v2964, 24
      %v2974 = vpop.permute.xlu0 %2973
      %2975 = vrot.lane.b32.xlu0 %v2965, 24
      %v2976 = vpop.permute.xlu0 %2975
      %2977 = vrot.lane.b32.xlu0 %v2966, 24
      %v2978 = vpop.permute.xlu0 %2977
      %2979 = vrot.lane.b32.xlu0 %v2967, 24
      %v2980 = vpop.permute.xlu0 %2979
      %2981 = vrot.lane.b32.xlu0 %v2968, 24
      %v2982 = vpop.permute.xlu0 %2981
      %2983 = vrot.lane.b32.xlu0 %v2969, 24
      %v2984 = vpop.permute.xlu0 %2983
      %2985 = vrot.lane.b32.xlu0 %v2970, 24
      %v2986 = vpop.permute.xlu0 %2985
      %v2987 = vunpack.c.l.b16 %v2255
      %v2988 = vunpack.c.l.b16 %v2265
      %v2989 = vunpack.c.l.b16 %v2279
      %v2990 = vunpack.c.l.b16 %v2289
      %v2991 = vunpack.c.l.b16 %v2303
      %v2992 = vunpack.c.l.b16 %v2313
      %v2993 = vunpack.c.l.b16 %v2327
      %v2994 = vunpack.c.l.b16 %v2337
      %v2995 = vunpack.c.l.b16 %v2351
      %v2996 = vunpack.c.l.b16 %v2361
      %v2997 = vunpack.c.l.b16 %v2375
      %v2998 = vunpack.c.l.b16 %v2385
      %v2999 = vunpack.c.l.b16 %v2399
      %v3000 = vunpack.c.l.b16 %v2409
      %v3001 = vunpack.c.l.b16 %v2423
      %v3002 = vunpack.c.l.b16 %v2433
      %v3003 = vpack.c.b16 %v2988, %v2987
      %v3004 = vpack.c.b16 %v2990, %v2989
      %v3005 = vpack.c.b16 %v2992, %v2991
      %v3006 = vpack.c.b16 %v2994, %v2993
      %v3007 = vpack.c.b16 %v2996, %v2995
      %v3008 = vpack.c.b16 %v2998, %v2997
      %v3009 = vpack.c.b16 %v3000, %v2999
      %v3010 = vpack.c.b16 %v3002, %v3001
      %3011 = vrot.lane.b32.xlu0 %v3003, 32
      %v3012 = vpop.permute.xlu0 %3011
      %3013 = vrot.lane.b32.xlu0 %v3004, 32
      %v3014 = vpop.permute.xlu0 %3013
      %3015 = vrot.lane.b32.xlu0 %v3005, 32
      %v3016 = vpop.permute.xlu0 %3015
      %3017 = vrot.lane.b32.xlu0 %v3006, 32
      %v3018 = vpop.permute.xlu0 %3017
      %3019 = vrot.lane.b32.xlu0 %v3007, 32
      %v3020 = vpop.permute.xlu0 %3019
      %3021 = vrot.lane.b32.xlu0 %v3008, 32
      %v3022 = vpop.permute.xlu0 %3021
      %3023 = vrot.lane.b32.xlu0 %v3009, 32
      %v3024 = vpop.permute.xlu0 %3023
      %3025 = vrot.lane.b32.xlu0 %v3010, 32
      %v3026 = vpop.permute.xlu0 %3025
      %v3027 = vunpack.c.l.b16 %v2469
      %v3028 = vunpack.c.l.b16 %v2472
      %v3029 = vunpack.c.l.b16 %v2476
      %v3030 = vunpack.c.l.b16 %v2479
      %v3031 = vunpack.c.l.b16 %v2483
      %v3032 = vunpack.c.l.b16 %v2486
      %v3033 = vunpack.c.l.b16 %v2490
      %v3034 = vunpack.c.l.b16 %v2493
      %v3035 = vunpack.c.l.b16 %v2497
      %v3036 = vunpack.c.l.b16 %v2500
      %v3037 = vunpack.c.l.b16 %v2504
      %v3038 = vunpack.c.l.b16 %v2507
      %v3039 = vunpack.c.l.b16 %v2511
      %v3040 = vunpack.c.l.b16 %v2514
      %v3041 = vunpack.c.l.b16 %v2518
      %v3042 = vunpack.c.l.b16 %v2521
      %v3043 = vpack.c.b16 %v3028, %v3027
      %v3044 = vpack.c.b16 %v3030, %v3029
      %v3045 = vpack.c.b16 %v3032, %v3031
      %v3046 = vpack.c.b16 %v3034, %v3033
      %v3047 = vpack.c.b16 %v3036, %v3035
      %v3048 = vpack.c.b16 %v3038, %v3037
      %v3049 = vpack.c.b16 %v3040, %v3039
      %v3050 = vpack.c.b16 %v3042, %v3041
      %3051 = vrot.lane.b32.xlu0 %v3043, 40
      %v3052 = vpop.permute.xlu0 %3051
      %3053 = vrot.lane.b32.xlu0 %v3044, 40
      %v3054 = vpop.permute.xlu0 %3053
      %3055 = vrot.lane.b32.xlu0 %v3045, 40
      %v3056 = vpop.permute.xlu0 %3055
      %3057 = vrot.lane.b32.xlu0 %v3046, 40
      %v3058 = vpop.permute.xlu0 %3057
      %3059 = vrot.lane.b32.xlu0 %v3047, 40
      %v3060 = vpop.permute.xlu0 %3059
      %3061 = vrot.lane.b32.xlu0 %v3048, 40
      %v3062 = vpop.permute.xlu0 %3061
      %3063 = vrot.lane.b32.xlu0 %v3049, 40
      %v3064 = vpop.permute.xlu0 %3063
      %3065 = vrot.lane.b32.xlu0 %v3050, 40
      %v3066 = vpop.permute.xlu0 %3065
      %v3075 = vunpack.c.l.b16 %v2523
      %v3076 = vunpack.c.l.b16 %v2524
      %v3077 = vunpack.c.l.b16 %v2525
      %v3078 = vunpack.c.l.b16 %v2526
      %v3079 = vunpack.c.l.b16 %v2527
      %v3080 = vunpack.c.l.b16 %v2528
      %v3081 = vunpack.c.l.b16 %v2529
      %v3082 = vunpack.c.l.b16 %v2530
      %v3083 = vunpack.c.l.b16 %v2531
      %v3084 = vunpack.c.l.b16 %v2532
      %v3085 = vunpack.c.l.b16 %v2533
      %v3086 = vunpack.c.l.b16 %v2534
      %v3087 = vunpack.c.l.b16 %v2535
      %v3088 = vunpack.c.l.b16 %v2536
      %v3089 = vunpack.c.l.b16 %v2537
      %v3090 = vunpack.c.l.b16 %v2538
      %v3091 = vpack.c.b16 %v3076, %v3075
      %v3092 = vpack.c.b16 %v3078, %v3077
      %v3093 = vpack.c.b16 %v3080, %v3079
      %v3094 = vpack.c.b16 %v3082, %v3081
      %v3095 = vpack.c.b16 %v3084, %v3083
      %v3096 = vpack.c.b16 %v3086, %v3085
      %v3097 = vpack.c.b16 %v3088, %v3087
      %v3098 = vpack.c.b16 %v3090, %v3089
      %3099 = vrot.lane.b32.xlu0 %v3091, 48
      %v3100 = vpop.permute.xlu0 %3099
      %3101 = vrot.lane.b32.xlu0 %v3092, 48
      %v3102 = vpop.permute.xlu0 %3101
      %3103 = vrot.lane.b32.xlu0 %v3093, 48
      %v3104 = vpop.permute.xlu0 %3103
      %3105 = vrot.lane.b32.xlu0 %v3094, 48
      %v3106 = vpop.permute.xlu0 %3105
      %3107 = vrot.lane.b32.xlu0 %v3095, 48
      %v3108 = vpop.permute.xlu0 %3107
      %3109 = vrot.lane.b32.xlu0 %v3096, 48
      %v3110 = vpop.permute.xlu0 %3109
      %3111 = vrot.lane.b32.xlu0 %v3097, 48
      %v3112 = vpop.permute.xlu0 %3111
      %3113 = vrot.lane.b32.xlu0 %v3098, 48
      %v3114 = vpop.permute.xlu0 %3113
      %v3115 = vunpack.c.l.b16 %v2560
      %v3116 = vunpack.c.l.b16 %v2570
      %v3117 = vunpack.c.l.b16 %v2584
      %v3118 = vunpack.c.l.b16 %v2594
      %v3119 = vunpack.c.l.b16 %v2608
      %v3120 = vunpack.c.l.b16 %v2618
      %v3121 = vunpack.c.l.b16 %v2632
      %v3122 = vunpack.c.l.b16 %v2642
      %v3123 = vunpack.c.l.b16 %v2656
      %v3124 = vunpack.c.l.b16 %v2666
      %v3125 = vunpack.c.l.b16 %v2680
      %v3126 = vunpack.c.l.b16 %v2690
      %v3127 = vunpack.c.l.b16 %v2704
      %v3128 = vunpack.c.l.b16 %v2714
      %v3129 = vunpack.c.l.b16 %v2728
      %v3130 = vunpack.c.l.b16 %v2738
      %v3131 = vpack.c.b16 %v3116, %v3115
      %v3132 = vpack.c.b16 %v3118, %v3117
      %v3133 = vpack.c.b16 %v3120, %v3119
      %v3134 = vpack.c.b16 %v3122, %v3121
      %v3135 = vpack.c.b16 %v3124, %v3123
      %v3136 = vpack.c.b16 %v3126, %v3125
      %v3137 = vpack.c.b16 %v3128, %v3127
      %v3138 = vpack.c.b16 %v3130, %v3129
      %3139 = vrot.lane.b32.xlu0 %v3131, 56
      %v3140 = vpop.permute.xlu0 %3139
      %3141 = vrot.lane.b32.xlu0 %v3132, 56
      %v3142 = vpop.permute.xlu0 %3141
      %3143 = vrot.lane.b32.xlu0 %v3133, 56
      %v3144 = vpop.permute.xlu0 %3143
      %3145 = vrot.lane.b32.xlu0 %v3134, 56
      %v3146 = vpop.permute.xlu0 %3145
      %3147 = vrot.lane.b32.xlu0 %v3135, 56
      %v3148 = vpop.permute.xlu0 %3147
      %3149 = vrot.lane.b32.xlu0 %v3136, 56
      %v3150 = vpop.permute.xlu0 %3149
      %3151 = vrot.lane.b32.xlu0 %v3137, 56
      %v3152 = vpop.permute.xlu0 %3151
      %3153 = vrot.lane.b32.xlu0 %v3138, 56
      %v3154 = vpop.permute.xlu0 %3153
      %v3155 = vunpack.c.l.b16 %v2774
      %v3156 = vunpack.c.l.b16 %v2777
      %v3157 = vunpack.c.l.b16 %v2781
      %v3158 = vunpack.c.l.b16 %v2784
      %v3159 = vunpack.c.l.b16 %v2788
      %v3160 = vunpack.c.l.b16 %v2791
      %v3161 = vunpack.c.l.b16 %v2795
      %v3162 = vunpack.c.l.b16 %v2798
      %v3163 = vunpack.c.l.b16 %v2802
      %v3164 = vunpack.c.l.b16 %v2805
      %v3165 = vunpack.c.l.b16 %v2809
      %v3166 = vunpack.c.l.b16 %v2812
      %v3167 = vunpack.c.l.b16 %v2816
      %v3168 = vunpack.c.l.b16 %v2819
      %v3169 = vunpack.c.l.b16 %v2823
      %v3170 = vunpack.c.l.b16 %v2826
      %v3171 = vpack.c.b16 %v3156, %v3155
      %v3172 = vpack.c.b16 %v3158, %v3157
      %v3173 = vpack.c.b16 %v3160, %v3159
      %v3174 = vpack.c.b16 %v3162, %v3161
      %v3175 = vpack.c.b16 %v3164, %v3163
      %v3176 = vpack.c.b16 %v3166, %v3165
      %v3177 = vpack.c.b16 %v3168, %v3167
      %v3178 = vpack.c.b16 %v3170, %v3169
      %3179 = vrot.lane.b32.xlu0 %v3171, 64
      %v3180 = vpop.permute.xlu0 %3179
      %3181 = vrot.lane.b32.xlu0 %v3172, 64
      %v3182 = vpop.permute.xlu0 %3181
      %3183 = vrot.lane.b32.xlu0 %v3173, 64
      %v3184 = vpop.permute.xlu0 %3183
      %3185 = vrot.lane.b32.xlu0 %v3174, 64
      %v3186 = vpop.permute.xlu0 %3185
      %3187 = vrot.lane.b32.xlu0 %v3175, 64
      %v3188 = vpop.permute.xlu0 %3187
      %3189 = vrot.lane.b32.xlu0 %v3176, 64
      %v3190 = vpop.permute.xlu0 %3189
      %3191 = vrot.lane.b32.xlu0 %v3177, 64
      %v3192 = vpop.permute.xlu0 %3191
      %3193 = vrot.lane.b32.xlu0 %v3178, 64
      %v3194 = vpop.permute.xlu0 %3193
      %v3197 = vsel %vm1521, %v2851, %v2884
      %v3200 = vsel %vm1521, %v2852, %v2886
      %v3203 = vsel %vm1521, %v2853, %v2888
      %v3206 = vsel %vm1521, %v2854, %v2890
      %v3209 = vsel %vm1521, %v2855, %v2892
      %v3212 = vsel %vm1521, %v2856, %v2894
      %v3215 = vsel %vm1521, %v2857, %v2896
      %v3218 = vsel %vm1521, %v2858, %v2898
      %v3220 = vsel %vm1546, %v3197, %v2924
      %v3222 = vsel %vm1546, %v3200, %v2926
      %v3224 = vsel %vm1546, %v3203, %v2928
      %v3226 = vsel %vm1546, %v3206, %v2930
      %v3228 = vsel %vm1546, %v3209, %v2932
      %v3230 = vsel %vm1546, %v3212, %v2934
      %v3232 = vsel %vm1546, %v3215, %v2936
      %v3234 = vsel %vm1546, %v3218, %v2938
      %v3236 = vsel %vm1563, %v3220, %v2972
      %v3238 = vsel %vm1563, %v3222, %v2974
      %v3240 = vsel %vm1563, %v3224, %v2976
      %v3242 = vsel %vm1563, %v3226, %v2978
      %v3244 = vsel %vm1563, %v3228, %v2980
      %v3246 = vsel %vm1563, %v3230, %v2982
      %v3248 = vsel %vm1563, %v3232, %v2984
      %v3250 = vsel %vm1563, %v3234, %v2986
      %v3252 = vsel %vm1580, %v3236, %v3012
      %v3254 = vsel %vm1580, %v3238, %v3014
      %v3256 = vsel %vm1580, %v3240, %v3016
      %v3258 = vsel %vm1580, %v3242, %v3018
      %v3260 = vsel %vm1580, %v3244, %v3020
      %v3262 = vsel %vm1580, %v3246, %v3022
      %v3264 = vsel %vm1580, %v3248, %v3024
      %v3266 = vsel %vm1580, %v3250, %v3026
      %v3268 = vsel %vm1597, %v3252, %v3052
      %v3270 = vsel %vm1597, %v3254, %v3054
      %v3272 = vsel %vm1597, %v3256, %v3056
      %v3274 = vsel %vm1597, %v3258, %v3058
      %v3276 = vsel %vm1597, %v3260, %v3060
      %v3278 = vsel %vm1597, %v3262, %v3062
      %v3280 = vsel %vm1597, %v3264, %v3064
      %v3282 = vsel %vm1597, %v3266, %v3066
      %v3284 = vsel %vm1614, %v3268, %v3100
      %v3286 = vsel %vm1614, %v3270, %v3102
      %v3288 = vsel %vm1614, %v3272, %v3104
      %v3290 = vsel %vm1614, %v3274, %v3106
      %v3292 = vsel %vm1614, %v3276, %v3108
      %v3294 = vsel %vm1614, %v3278, %v3110
      %v3296 = vsel %vm1614, %v3280, %v3112
      %v3298 = vsel %vm1614, %v3282, %v3114
      %v3300 = vsel %vm1631, %v3284, %v3140
      %v3302 = vsel %vm1631, %v3286, %v3142
      %v3304 = vsel %vm1631, %v3288, %v3144
      %v3306 = vsel %vm1631, %v3290, %v3146
      %v3308 = vsel %vm1631, %v3292, %v3148
      %v3310 = vsel %vm1631, %v3294, %v3150
      %v3312 = vsel %vm1631, %v3296, %v3152
      %v3314 = vsel %vm1631, %v3298, %v3154
      %v3316 = vsel %vm1648, %v3300, %v3180
      %v3318 = vsel %vm1648, %v3302, %v3182
      %v3320 = vsel %vm1648, %v3304, %v3184
      %v3322 = vsel %vm1648, %v3306, %v3186
      %v3324 = vsel %vm1648, %v3308, %v3188
      %v3326 = vsel %vm1648, %v3310, %v3190
      %v3328 = vsel %vm1648, %v3312, %v3192
      %v3330 = vsel %vm1648, %v3314, %v3194
      %v3331 = vsel %vm1698, %v3316, 0
      %v3333 = vsel %vm1698, %v3318, 0
      %v3335 = vsel %vm1698, %v3320, 0
      %v3337 = vsel %vm1698, %v3322, 0
      %v3339 = vsel %vm1698, %v3324, 0
      %v3341 = vsel %vm1698, %v3326, 0
      %v3343 = vsel %vm1698, %v3328, 0
      %v3345 = vsel %vm1698, %v3330, 0
      %3347 = vmatprep.subr.bf16.mxu0 0
      %3348 = vmatpush1.bf16.msra.mxu0 %v1689
      %3349 = vmatprep.subr.bf16.mxu0 0
      %3350 = vmatpush1.bf16.msra.mxu0 %v1690
      %3351 = vmatprep.subr.bf16.mxu0 0
      %3352 = vmatpush1.bf16.msra.mxu0 %v1691
      %3353 = vmatprep.subr.bf16.mxu0 0
      %3354 = vmatpush1.bf16.msra.mxu0 %v1692
      %3355 = vmatprep.subr.bf16.mxu0 0
      %3356 = vmatpush1.bf16.msra.mxu0 %v1717
      %3357 = vmatprep.subr.bf16.mxu0 0
      %3358 = vmatpush1.bf16.msra.mxu0 0
      %3359 = vmatprep.subr.bf16.mxu0 0
      %3360 = vmatpush1.bf16.msra.mxu0 0
      %3361 = vmatprep.subr.bf16.mxu0 0
      %3362 = vmatpush1.bf16.msra.mxu0 0
      %3363 = vmatprep.subr.bf16.mxu0 0
      %3364 = vmatpush1.bf16.msra.mxu0 0
      %3365 = vmatprep.subr.bf16.mxu0 0
      %3366 = vmatpush1.bf16.msra.mxu0 0
      %3367 = vmatprep.subr.bf16.mxu0 0
      %3368 = vmatpush1.bf16.msra.mxu0 0
      %3369 = vmatprep.subr.bf16.mxu0 0
      %3370 = vmatpush1.bf16.msra.mxu0 0
      %3371 = vmatprep.subr.bf16.mxu0 0
      %3372 = vmatpush1.bf16.msra.mxu0 0
      %3373 = vmatprep.subr.bf16.mxu0 0
      %3374 = vmatpush1.bf16.msra.mxu0 0
      %3375 = vmatprep.subr.bf16.mxu0 0
      %3376 = vmatpush1.bf16.msra.mxu0 0
      %3377 = vmatprep.subr.bf16.mxu0 0
      %3378 = vmatpush1.bf16.msra.mxu0 0
      %3379 = vmatprep.mubr.bf16.mxu0 0
      %3380 = vmatmul.mubr.bf16.gmra.mrb[0].mxu0 %v3331
      %v3381 = vpop.f32.mrb[0].mxu0
      %v3382 = vadd.f32 %v1669, %v3381
      %v3383 = vpop.f32.mrb[0].mxu0
      %v3384 = vpop.f32.mrb[0].mxu0
      %v3385 = vadd.f32 %v1669, %v3384
      %v3386 = vpop.f32.mrb[0].mxu0
      %3387 = vmatprep.mubr.bf16.mxu0 0
      %3388 = vmatmul.mubr.bf16.gmra.mrb[0].mxu0 %v3333
      %v3389 = vpop.f32.mrb[0].mxu0
      %v3390 = vadd.f32 %v1669, %v3389
      %v3391 = vpop.f32.mrb[0].mxu0
      %v3392 = vpop.f32.mrb[0].mxu0
      %v3393 = vadd.f32 %v1669, %v3392
      %v3394 = vpop.f32.mrb[0].mxu0
      %3395 = vmatprep.mubr.bf16.mxu0 0
      %3396 = vmatmul.mubr.bf16.gmra.mrb[0].mxu0 %v3335
      %v3397 = vpop.f32.mrb[0].mxu0
      %v3398 = vadd.f32 %v1669, %v3397
      %v3399 = vpop.f32.mrb[0].mxu0
      %v3400 = vpop.f32.mrb[0].mxu0
      %v3401 = vadd.f32 %v1669, %v3400
      %v3402 = vpop.f32.mrb[0].mxu0
      %3403 = vmatprep.mubr.bf16.mxu0 0
      %3404 = vmatmul.mubr.bf16.gmra.mrb[0].mxu0 %v3337
      %v3405 = vpop.f32.mrb[0].mxu0
      %v3406 = vadd.f32 %v1669, %v3405
      %v3407 = vpop.f32.mrb[0].mxu0
      %v3408 = vpop.f32.mrb[0].mxu0
      %v3409 = vadd.f32 %v1669, %v3408
      %v3410 = vpop.f32.mrb[0].mxu0
      %3411 = vmatprep.mubr.bf16.mxu0 0
      %3412 = vmatmul.mubr.bf16.gmra.mrb[0].mxu0 %v3339
      %v3413 = vpop.f32.mrb[0].mxu0
      %v3414 = vadd.f32 %v1669, %v3413
      %v3415 = vpop.f32.mrb[0].mxu0
      %v3416 = vpop.f32.mrb[0].mxu0
      %v3417 = vadd.f32 %v1669, %v3416
      %v3418 = vpop.f32.mrb[0].mxu0
      %3419 = vmatprep.mubr.bf16.mxu0 0
      %3420 = vmatmul.mubr.bf16.gmra.mrb[0].mxu0 %v3341
      %v3421 = vpop.f32.mrb[0].mxu0
      %v3422 = vadd.f32 %v1669, %v3421
      %v3423 = vpop.f32.mrb[0].mxu0
      %v3424 = vpop.f32.mrb[0].mxu0
      %v3425 = vadd.f32 %v1669, %v3424
      %v3426 = vpop.f32.mrb[0].mxu0
      %3427 = vmatprep.mubr.bf16.mxu0 0
      %3428 = vmatmul.mubr.bf16.gmra.mrb[0].mxu0 %v3343
      %v3429 = vpop.f32.mrb[0].mxu0
      %v3430 = vadd.f32 %v1669, %v3429
      %v3431 = vpop.f32.mrb[0].mxu0
      %v3432 = vpop.f32.mrb[0].mxu0
      %v3433 = vadd.f32 %v1669, %v3432
      %v3434 = vpop.f32.mrb[0].mxu0
      %3435 = vmatprep.mubr.bf16.mxu0 0
      %3436 = vmatmul.mubr.bf16.gmra.mrb[0].mxu0 %v3345
      %v3437 = vpop.f32.mrb[0].mxu0
      %v3438 = vadd.f32 %v1669, %v3437
      %v3439 = vpop.f32.mrb[0].mxu0
      %v3440 = vpop.f32.mrb[0].mxu0
      %v3441 = vadd.f32 %v1669, %v3440
      %v3442 = vpop.f32.mrb[0].mxu0
      %3443 = vdwg.mxu0
      %v3444 = vmax.f32 %v3382, 0.0
      %v3445 = vmax.f32 %v3385, 0.0
      %v3446 = vmax.f32 %v3390, 0.0
      %v3447 = vmax.f32 %v3393, 0.0
      %v3448 = vmax.f32 %v3398, 0.0
      %v3449 = vmax.f32 %v3401, 0.0
      %v3450 = vmax.f32 %v3406, 0.0
      %v3451 = vmax.f32 %v3409, 0.0
      %v3452 = vmax.f32 %v3414, 0.0
      %v3453 = vmax.f32 %v3417, 0.0
      %v3454 = vmax.f32 %v3422, 0.0
      %v3455 = vmax.f32 %v3425, 0.0
      %v3456 = vmax.f32 %v3430, 0.0
      %v3457 = vmax.f32 %v3433, 0.0
      %v3458 = vmax.f32 %v3438, 0.0
      %v3459 = vmax.f32 %v3441, 0.0
      %v3460 = vpack.c.bf16 %v3445, %v3444
      %v3461 = vpack.c.bf16 %v3447, %v3446
      %v3462 = vpack.c.bf16 %v3449, %v3448
      %v3463 = vpack.c.bf16 %v3451, %v3450
      %v3464 = vpack.c.bf16 %v3453, %v3452
      %v3465 = vpack.c.bf16 %v3455, %v3454
      %v3466 = vpack.c.bf16 %v3457, %v3456
      %v3467 = vpack.c.bf16 %v3459, %v3458
      %v3476 = vunpack.c.l.b16 %v3460
      %v3477 = vunpack.c.h.b16 %v3460
      %v3478 = vunpack.c.l.b16 %v3461
      %v3479 = vunpack.c.h.b16 %v3461
      %v3480 = vunpack.c.l.b16 %v3462
      %v3481 = vunpack.c.h.b16 %v3462
      %v3482 = vunpack.c.l.b16 %v3463
      %v3483 = vunpack.c.h.b16 %v3463
      %v3484 = vunpack.c.l.b16 %v3464
      %v3485 = vunpack.c.h.b16 %v3464
      %v3486 = vunpack.c.l.b16 %v3465
      %v3487 = vunpack.c.h.b16 %v3465
      %v3488 = vunpack.c.l.b16 %v3466
      %v3489 = vunpack.c.h.b16 %v3466
      %v3490 = vunpack.c.l.b16 %v3467
      %v3491 = vunpack.c.h.b16 %v3467
      %v3492 = vpack.c.b16 %v3476, %v3476
      %v3493 = vpack.c.b16 %v3477, %v3477
      %v3494 = vpack.c.b16 %v3478, %v3478
      %v3495 = vpack.c.b16 %v3479, %v3479
      %v3496 = vpack.c.b16 %v3480, %v3480
      %v3497 = vpack.c.b16 %v3481, %v3481
      %v3498 = vpack.c.b16 %v3482, %v3482
      %v3499 = vpack.c.b16 %v3483, %v3483
      %v3500 = vpack.c.b16 %v3484, %v3484
      %v3501 = vpack.c.b16 %v3485, %v3485
      %v3502 = vpack.c.b16 %v3486, %v3486
      %v3503 = vpack.c.b16 %v3487, %v3487
      %v3504 = vpack.c.b16 %v3488, %v3488
      %v3505 = vpack.c.b16 %v3489, %v3489
      %v3506 = vpack.c.b16 %v3490, %v3490
      %v3507 = vpack.c.b16 %v3491, %v3491
      %3524 = vst [vmem:[%s221 + $0x40] sm:$0xf] %v3492
      %3525 = vst [vmem:[%s221 + $0x44] sm:$0xf] %v3493
      %3526 = vst [vmem:[%s221 + $0x48] sm:$0xf] %v3494
      %3527 = vst [vmem:[%s221 + $0x4c] sm:$0xf] %v3495
      %3528 = vst [vmem:[%s221 + $0x50] sm:$0xf] %v3496
      %3529 = vst [vmem:[%s221 + $0x54] sm:$0xf] %v3497
      %3530 = vst [vmem:[%s221 + $0x58] sm:$0xf] %v3498
      %3531 = vst [vmem:[%s221 + $0x5c] sm:$0xf] %v3499
      %3532 = vst [vmem:[%s221 + $0x60] sm:$0xf] %v3500
      %3533 = vst [vmem:[%s221 + $0x64] sm:$0xf] %v3501
      %3534 = vst [vmem:[%s221 + $0x68] sm:$0xf] %v3502
      %3535 = vst [vmem:[%s221 + $0x6c] sm:$0xf] %v3503
      %3536 = vst [vmem:[%s221 + $0x70] sm:$0xf] %v3504
      %3537 = vst [vmem:[%s221 + $0x74] sm:$0xf] %v3505
      %3538 = vst [vmem:[%s221 + $0x78] sm:$0xf] %v3506
      %3539 = vst [vmem:[%s221 + $0x7c] sm:$0xf] %v3507
      %p3540 = scmp.lt.s32.totalorder %s19, 1
      %s3541 = scalar_select %p3540, %s19, 1
      %p3542 = scmp.lt.s32.totalorder %s18, 0
      %s3543 = scalar_select %p3542, %s18, 0
      %s3544 = smul.addr %s3541, 32
      %s3545 = sadd.s32 %s3543, %s3544
      %s3546 = smul.addr %s3545, 4
      %s3547 = scalar_lea.vmem %s3, %s3546
      // Predicated region
      $region33: #{base_conv_forward_nhwc.1} parent=31 // pred_check
        %p3548 = pneg %p124
      $region34: #{base_conv_forward_nhwc.1} parent=31 // pred_check_branch
        %3550 = sbr.rel (%p3548) target = $region36
      $region35: #{base_conv_forward_nhwc.1} parent=31 // pred_region
        _
      $region36: #{base_conv_forward_nhwc.1} parent=31 // pred_fallthru
        _
    $region32: #{base_conv_forward_nhwc.1} parent=5 // pred_fallthru
      _
    %p3551 = scmp.le.s32.totalorder 2, %s9
    // Predicated region
    $region37: #{base_conv_forward_nhwc.1} parent=5 // pred_check
      %p3552 = pneg %p3551
    $region38: #{base_conv_forward_nhwc.1} parent=5 // pred_check_branch
      %3554 = sbr.rel (%p3552) target = $region40
    $region39: #{base_conv_forward_nhwc.1} parent=5 // pred_region
      %s3555 = ssub.s32 %s9, 2
      // Predicated region
      $region41: #{base_conv_forward_nhwc.1} parent=39 // pred_check
        %p3556 = pneg %p130
      $region42: #{base_conv_forward_nhwc.1} parent=39 // pred_check_branch
        %3558 = sbr.rel (%p3556) target = $region44
      $region43: #{base_conv_forward_nhwc.1} parent=39 // pred_region
        %p3559 = scmp.lt.s32.totalorder %s21, 1
        %s3560 = scalar_select %p3559, %s21, 1
        %p3561 = scmp.lt.s32.totalorder %s20, 0
        %s3562 = scalar_select %p3561, %s20, 0
        %s3563 = smul.addr %s3560, 32
        %s3564 = sadd.s32 %s3562, %s3563
        %s3565 = smul.addr %s3564, 4
        %s3566 = scalar_lea.vmem %s3, %s3565
      $region44: #{base_conv_forward_nhwc.1} parent=39 // pred_fallthru
        _
    $region40: #{base_conv_forward_nhwc.1} parent=5 // pred_fallthru
      _
  $region6: #{base_conv_forward_nhwc.1} parent=0 // loop_footer
    %s13 = sadd.s32 1, %s9
  $region7: #{base_conv_forward_nhwc.1} parent=0 // loop_footer_branch
    %8 = sbr.rel target = $region3
  $region8: #{base_conv_forward_nhwc.1} parent=0 // loop_exit
    _

</llo_original>
